<compile_context>
chip_gen: v5e
topology: v5e:2x2
jax: 0.10.0
libtpu: 0.0.40
codegen_flags: <defaults>
</compile_context>

<pallas_src>
import functools

import jax
import jax.numpy as jnp
from jax.experimental import pallas as pl
from jax.experimental.pallas import tpu as pltpu


# ---------------------------------------------------------------------------
# Kernel 1: fused self-attention + residual + LayerNorm1 (one program / batch).
# ---------------------------------------------------------------------------
def _attn_ln_kernel(x_ref, wq_ref, bq_ref, wk_ref, bk_ref, wv_ref, bv_ref,
                    wo_ref, bo_ref, g_ref, beta_ref, o_ref,
                    *, num_heads, scale, eps):
    x = x_ref[0].astype(jnp.float32)                       # (N, D)
    qk_in = x + x                                          # abs_pos_embed(x) + x (Identity)

    q = jnp.dot(qk_in, wq_ref[...], preferred_element_type=jnp.float32) + bq_ref[...]
    k = jnp.dot(qk_in, wk_ref[...], preferred_element_type=jnp.float32) + bk_ref[...]
    v = jnp.dot(x,     wv_ref[...], preferred_element_type=jnp.float32) + bv_ref[...]
    q = q * scale

    d = x.shape[-1]
    dh = d // num_heads

    # Per-head attention with out_proj fused into the head loop (no concat).
    acc = jnp.zeros_like(x)                                # f32 (N, D)
    for h in range(num_heads):
        lo, hi = h * dh, (h + 1) * dh
        q_h = q[:, lo:hi]
        k_h = k[:, lo:hi]
        v_h = v[:, lo:hi]
        # scores: contract head_dim of both operands -> (N, N)
        s = jax.lax.dot_general(q_h, k_h, (((1,), (1,)), ((), ())),
                                preferred_element_type=jnp.float32)
        # TODO(synk): additive attention mask not implemented (mask=None path only).
        s = s - jnp.max(s, axis=-1, keepdims=True)
        p = jnp.exp(s)
        p = p / jnp.sum(p, axis=-1, keepdims=True)
        o_h = jnp.dot(p, v_h, preferred_element_type=jnp.float32)          # (N, dh)
        acc = acc + jnp.dot(o_h, wo_ref[lo:hi, :],
                            preferred_element_type=jnp.float32)

    # out_proj bias + residual (dropout p>0 would go here; identity in eval).
    # TODO(synk): train-mode dropout not implemented (eval semantics only).
    y = acc + bo_ref[...] + x

    mean = jnp.mean(y, axis=-1, keepdims=True)
    var = jnp.mean(jnp.square(y - mean), axis=-1, keepdims=True)
    y = (y - mean) * jax.lax.rsqrt(var + eps)
    y = y * g_ref[...] + beta_ref[...]
    o_ref[0] = y.astype(o_ref.dtype)


# ---------------------------------------------------------------------------
# Kernel 2: fused FFN (fc1 -> ReLU -> fc2) + residual + LayerNorm2.
# ---------------------------------------------------------------------------
def _ffn_ln_kernel(x_ref, w1_ref, b1_ref, w2_ref, b2_ref, g_ref, beta_ref,
                   o_ref, *, eps):
    xv = x_ref[...]                                        # (tm, D)
    x = xv.astype(jnp.float32)
    h = jnp.dot(xv, w1_ref[...], preferred_element_type=jnp.float32) + b1_ref[...]
    h = jnp.maximum(h, 0.0)                                # activation='relu'
    y = jnp.dot(h.astype(w2_ref.dtype), w2_ref[...],
                preferred_element_type=jnp.float32) + b2_ref[...]
    y = y + x                                              # residual

    mean = jnp.mean(y, axis=-1, keepdims=True)
    var = jnp.mean(jnp.square(y - mean), axis=-1, keepdims=True)
    y = (y - mean) * jax.lax.rsqrt(var + eps)
    y = y * g_ref[...] + beta_ref[...]
    o_ref[...] = y.astype(o_ref.dtype)


# ---------------------------------------------------------------------------
# Wrappers
# ---------------------------------------------------------------------------
_VMEM_LIMIT = 64 * 1024 * 1024


def _attention_block(x, p, num_heads, *, eps=1e-5):
    b, n, d = x.shape
    scale = (d // num_heads) ** -0.5
    kernel = functools.partial(_attn_ln_kernel, num_heads=num_heads,
                               scale=scale, eps=eps)
    wspec = pl.BlockSpec((d, d), lambda i: (0, 0))
    vspec = pl.BlockSpec((1, d), lambda i: (0, 0))
    return pl.pallas_call(
        kernel,
        out_shape=jax.ShapeDtypeStruct((b, n, d), x.dtype),
        grid=(b,),
        in_specs=[
            pl.BlockSpec((1, n, d), lambda i: (i, 0, 0)),
            wspec, vspec,            # q_proj
            wspec, vspec,            # k_proj
            wspec, vspec,            # v_proj
            wspec, vspec,            # out_proj
            vspec, vspec,            # LayerNorm1 gamma / beta
        ],
        out_specs=pl.BlockSpec((1, n, d), lambda i: (i, 0, 0)),
        compiler_params=pltpu.CompilerParams(
            dimension_semantics=("parallel",),
            vmem_limit_bytes=_VMEM_LIMIT,
        ),
    )(x,
      p["wq"], p["bq"].reshape(1, d),
      p["wk"], p["bk"].reshape(1, d),
      p["wv"], p["bv"].reshape(1, d),
      p["wo"], p["bo"].reshape(1, d),
      p["ln1_g"].reshape(1, d), p["ln1_b"].reshape(1, d))


def _ffn_block(x, p, *, tm=256, eps=1e-5):
    b, n, d = x.shape
    f = p["w1"].shape[1]
    m = b * n
    x2 = x.reshape(m, d)

    # Row tile: as large as fits (tm is the main tuning knob per perf review).
    if m <= tm:
        tm_eff, m_pad = m, m
    else:
        tm_eff = tm                                   # must be a multiple of 8
        m_pad = pl.cdiv(m, tm_eff) * tm_eff
        if m_pad != m:
            # TODO(synk): handle the ragged tail with a masked final block to
            # avoid this HBM->HBM pad copy when B*N doesn't divide tm.
            x2 = jnp.pad(x2, ((0, m_pad - m), (0, 0)))

    kernel = functools.partial(_ffn_ln_kernel, eps=eps)
    out = pl.pallas_call(
        kernel,
        out_shape=jax.ShapeDtypeStruct((m_pad, d), x.dtype),
        grid=(m_pad // tm_eff,),
        in_specs=[
            pl.BlockSpec((tm_eff, d), lambda i: (i, 0)),
            pl.BlockSpec((d, f), lambda i: (0, 0)),
            pl.BlockSpec((1, f), lambda i: (0, 0)),
            pl.BlockSpec((f, d), lambda i: (0, 0)),
            pl.BlockSpec((1, d), lambda i: (0, 0)),
            pl.BlockSpec((1, d), lambda i: (0, 0)),
            pl.BlockSpec((1, d), lambda i: (0, 0)),
        ],
        out_specs=pl.BlockSpec((tm_eff, d), lambda i: (i, 0)),
        compiler_params=pltpu.CompilerParams(
            dimension_semantics=("parallel",),
            vmem_limit_bytes=_VMEM_LIMIT,
        ),
    )(x2, p["w1"], p["b1"].reshape(1, f), p["w2"], p["b2"].reshape(1, d),
      p["ln2_g"].reshape(1, d), p["ln2_b"].reshape(1, d))
    return out[:m].reshape(b, n, d)


def transformer_encoder(x, layer_params, num_heads, *, tm=256):
    """x: (B, N, D) -> (B, N, D); stacked TransformerEncoderLayer forward."""
    for p in layer_params:
        x = _attention_block(x, p, num_heads)
        x = _ffn_block(x, p, tm=tm)
    return x


# ---------------------------------------------------------------------------
# Parameter init (matches nn.Linear / nn.LayerNorm defaults) and JAX reference.
# ---------------------------------------------------------------------------
def _init_layer(key, d, f):
    ks = jax.random.split(key, 12)

    def linear(kw, kb, fan_in, fan_out):
        lim = fan_in ** -0.5
        w = jax.random.uniform(kw, (fan_in, fan_out), jnp.float32, -lim, lim)
        b = jax.random.uniform(kb, (fan_out,), jnp.float32, -lim, lim)
        return w, b

    wq, bq = linear(ks[0], ks[1], d, d)
    wk, bk = linear(ks[2], ks[3], d, d)
    wv, bv = linear(ks[4], ks[5], d, d)
    wo, bo = linear(ks[6], ks[7], d, d)
    w1, b1 = linear(ks[8], ks[9], d, f)
    w2, b2 = linear(ks[10], ks[11], f, d)
    ones = jnp.ones((d,), jnp.float32)
    zeros = jnp.zeros((d,), jnp.float32)
    return dict(wq=wq, bq=bq, wk=wk, bk=bk, wv=wv, bv=bv, wo=wo, bo=bo,
                w1=w1, b1=b1, w2=w2, b2=b2,
                ln1_g=ones, ln1_b=zeros, ln2_g=ones, ln2_b=zeros)


def _reference(x, layer_params, num_heads, eps=1e-5):
    hp = jax.lax.Precision.HIGHEST

    def layer_norm(y, g, b):
        mean = jnp.mean(y, -1, keepdims=True)
        var = jnp.mean(jnp.square(y - mean), -1, keepdims=True)
        return (y - mean) * jax.lax.rsqrt(var + eps) * g + b

    b_, n_, d_ = x.shape
    dh = d_ // num_heads
    scale = dh ** -0.5
    for p in layer_params:
        shortcut = x
        qk = x + x
        q = jnp.matmul(qk, p["wq"], precision=hp) + p["bq"]
        k = jnp.matmul(qk, p["wk"], precision=hp) + p["bk"]
        v = jnp.matmul(x,  p["wv"], precision=hp) + p["bv"]

        def split(t):
            return t.reshape(b_, n_, num_heads, dh).transpose(0, 2, 1, 3)

        q, k, v = split(q) * scale, split(k), split(v)
        s = jnp.einsum('bhid,bhjd->bhij', q, k, precision=hp)
        s = s - jnp.max(s, -1, keepdims=True)
        a = jnp.exp(s)
        a = a / jnp.sum(a, -1, keepdims=True)
        o = jnp.einsum('bhij,bhjd->bhid', a, v, precision=hp)
        o = o.transpose(0, 2, 1, 3).reshape(b_, n_, d_)
        o = jnp.matmul(o, p["wo"], precision=hp) + p["bo"]
        x = layer_norm(o + shortcut, p["ln1_g"], p["ln1_b"])

        shortcut = x
        h = jnp.maximum(jnp.matmul(x, p["w1"], precision=hp) + p["b1"], 0.0)
        y = jnp.matmul(h, p["w2"], precision=hp) + p["b2"]
        x = layer_norm(y + shortcut, p["ln2_g"], p["ln2_b"])
    return x


if __name__ == "__main__":
    # Small but lane-dense shapes (feature dims multiples of 128/256 per perf review).
    num_layers = 2
    hidden_dim = 128
    nhead = 4
    dim_feedforward = 256
    batch, seq = 2, 16

    key = jax.random.PRNGKey(0)
    keys = jax.random.split(key, num_layers + 1)
    x = jax.random.normal(keys[0], (batch, seq, hidden_dim), dtype=jnp.float32)
    params = [_init_layer(k, hidden_dim, dim_feedforward) for k in keys[1:]]

    y = transformer_encoder(x, params, nhead, tm=256)
    y = jax.block_until_ready(y)

    y_ref = _reference(x, params, nhead)
    assert y.shape == (batch, seq, hidden_dim)
    assert jnp.allclose(y, y_ref, atol=2e-3, rtol=2e-3), \
        float(jnp.max(jnp.abs(y - y_ref)))

    print("KERNEL_OK")
</pallas_src>

<mosaic_0001>
module attributes {stable_mosaic.version = 11 : i64} {
  func.func @_attn_ln_kernel(%arg0: i32, %arg1: memref<1x16x128xf32, #tpu.memory_space<vmem>>, %arg2: memref<128x128xf32, #tpu.memory_space<vmem>>, %arg3: memref<1x128xf32, #tpu.memory_space<vmem>>, %arg4: memref<128x128xf32, #tpu.memory_space<vmem>>, %arg5: memref<1x128xf32, #tpu.memory_space<vmem>>, %arg6: memref<128x128xf32, #tpu.memory_space<vmem>>, %arg7: memref<1x128xf32, #tpu.memory_space<vmem>>, %arg8: memref<128x128xf32, #tpu.memory_space<vmem>>, %arg9: memref<1x128xf32, #tpu.memory_space<vmem>>, %arg10: memref<1x128xf32, #tpu.memory_space<vmem>>, %arg11: memref<1x128xf32, #tpu.memory_space<vmem>>, %arg12: memref<1x16x128xf32, #tpu.memory_space<vmem>>) attributes {dimension_semantics = [#tpu.dimension_semantics<parallel>], iteration_bounds = array<i64: 2>, scalar_prefetch = 0 : i64, scratch_operands = 0 : i64, tpu.core_type = #tpu.core_type<tc>, window_params = [{transform_indices = @transform_0, window_bounds = array<i64: 1, 16, 128>}, {pipeline_mode = #tpu.pipeline_mode<synchronous>, transform_indices = @transform_1, window_bounds = array<i64: 128, 128>}, {pipeline_mode = #tpu.pipeline_mode<synchronous>, transform_indices = @transform_2, window_bounds = array<i64: 1, 128>}, {pipeline_mode = #tpu.pipeline_mode<synchronous>, transform_indices = @transform_3, window_bounds = array<i64: 128, 128>}, {pipeline_mode = #tpu.pipeline_mode<synchronous>, transform_indices = @transform_4, window_bounds = array<i64: 1, 128>}, {pipeline_mode = #tpu.pipeline_mode<synchronous>, transform_indices = @transform_5, window_bounds = array<i64: 128, 128>}, {pipeline_mode = #tpu.pipeline_mode<synchronous>, transform_indices = @transform_6, window_bounds = array<i64: 1, 128>}, {pipeline_mode = #tpu.pipeline_mode<synchronous>, transform_indices = @transform_7, window_bounds = array<i64: 128, 128>}, {pipeline_mode = #tpu.pipeline_mode<synchronous>, transform_indices = @transform_8, window_bounds = array<i64: 1, 128>}, {pipeline_mode = #tpu.pipeline_mode<synchronous>, transform_indices = @transform_9, window_bounds = array<i64: 1, 128>}, {pipeline_mode = #tpu.pipeline_mode<synchronous>, transform_indices = @transform_10, window_bounds = array<i64: 1, 128>}, {transform_indices = @transform_11, window_bounds = array<i64: 1, 16, 128>}]} {
    %c0 = arith.constant 0 : index
    %c0_0 = arith.constant 0 : index
    %c0_1 = arith.constant 0 : index
    %0 = vector.load %arg1[%c0, %c0_0, %c0_1] : memref<1x16x128xf32, #tpu.memory_space<vmem>>, vector<1x16x128xf32>
    %1 = vector.shape_cast %0 : vector<1x16x128xf32> to vector<16x128xf32>
    %2 = arith.addf %1, %1 : vector<16x128xf32>
    %c0_2 = arith.constant 0 : index
    %c0_3 = arith.constant 0 : index
    %3 = vector.load %arg2[%c0_2, %c0_3] : memref<128x128xf32, #tpu.memory_space<vmem>>, vector<128x128xf32>
    %cst = arith.constant dense<0.000000e+00> : vector<16x128xf32>
    %4 = tpu.matmul %2, %3, %cst {dimension_numbers = #tpu.dot_dimension_numbers<[1], [0], [0], [1], [0, 0, 1, 1], [], []>} : vector<16x128xf32>, vector<128x128xf32>, vector<16x128xf32> -> vector<16x128xf32>
    %c0_4 = arith.constant 0 : index
    %c0_5 = arith.constant 0 : index
    %5 = vector.load %arg3[%c0_4, %c0_5] : memref<1x128xf32, #tpu.memory_space<vmem>>, vector<1x128xf32>
    %6 = vector.broadcast %5 : vector<1x128xf32> to vector<16x128xf32>
    %7 = arith.addf %4, %6 : vector<16x128xf32>
    %c0_6 = arith.constant 0 : index
    %c0_7 = arith.constant 0 : index
    %8 = vector.load %arg4[%c0_6, %c0_7] : memref<128x128xf32, #tpu.memory_space<vmem>>, vector<128x128xf32>
    %cst_8 = arith.constant dense<0.000000e+00> : vector<16x128xf32>
    %9 = tpu.matmul %2, %8, %cst_8 {dimension_numbers = #tpu.dot_dimension_numbers<[1], [0], [0], [1], [0, 0, 1, 1], [], []>} : vector<16x128xf32>, vector<128x128xf32>, vector<16x128xf32> -> vector<16x128xf32>
    %c0_9 = arith.constant 0 : index
    %c0_10 = arith.constant 0 : index
    %10 = vector.load %arg5[%c0_9, %c0_10] : memref<1x128xf32, #tpu.memory_space<vmem>>, vector<1x128xf32>
    %11 = vector.broadcast %10 : vector<1x128xf32> to vector<16x128xf32>
    %12 = arith.addf %9, %11 : vector<16x128xf32>
    %c0_11 = arith.constant 0 : index
    %c0_12 = arith.constant 0 : index
    %13 = vector.load %arg6[%c0_11, %c0_12] : memref<128x128xf32, #tpu.memory_space<vmem>>, vector<128x128xf32>
    %cst_13 = arith.constant dense<0.000000e+00> : vector<16x128xf32>
    %14 = tpu.matmul %1, %13, %cst_13 {dimension_numbers = #tpu.dot_dimension_numbers<[1], [0], [0], [1], [0, 0, 1, 1], [], []>} : vector<16x128xf32>, vector<128x128xf32>, vector<16x128xf32> -> vector<16x128xf32>
    %c0_14 = arith.constant 0 : index
    %c0_15 = arith.constant 0 : index
    %15 = vector.load %arg7[%c0_14, %c0_15] : memref<1x128xf32, #tpu.memory_space<vmem>>, vector<1x128xf32>
    %16 = vector.broadcast %15 : vector<1x128xf32> to vector<16x128xf32>
    %17 = arith.addf %14, %16 : vector<16x128xf32>
    %cst_16 = arith.constant 0.176776692 : f32
    %18 = vector.broadcast %cst_16 : f32 to vector<16x128xf32>
    %19 = arith.mulf %7, %18 : vector<16x128xf32>
    %cst_17 = arith.constant 0.000000e+00 : f32
    %20 = vector.broadcast %cst_17 : f32 to vector<16x128xf32>
    %21 = vector.extract_strided_slice %19 {offsets = [0, 0], sizes = [16, 32], strides = [1, 1]} : vector<16x128xf32> to vector<16x32xf32>
    %22 = vector.extract_strided_slice %12 {offsets = [0, 0], sizes = [16, 32], strides = [1, 1]} : vector<16x128xf32> to vector<16x32xf32>
    %23 = vector.extract_strided_slice %17 {offsets = [0, 0], sizes = [16, 32], strides = [1, 1]} : vector<16x128xf32> to vector<16x32xf32>
    %cst_18 = arith.constant dense<0.000000e+00> : vector<16x16xf32>
    %24 = tpu.matmul %21, %22, %cst_18 {dimension_numbers = #tpu.dot_dimension_numbers<[1], [1], [0], [0], [0, 0, 1, 0], [], []>} : vector<16x32xf32>, vector<16x32xf32>, vector<16x16xf32> -> vector<16x16xf32>
    %cst_19 = arith.constant dense<0xFF800000> : vector<16xf32>
    %25 = vector.multi_reduction <maximumf>, %24, %cst_19 [1] : vector<16x16xf32> to vector<16xf32>
    %26 = vector.shape_cast %25 : vector<16xf32> to vector<16x1xf32>
    %27 = vector.broadcast %26 : vector<16x1xf32> to vector<16x16xf32>
    %28 = arith.subf %24, %27 : vector<16x16xf32>
    %29 = math.exp %28 : vector<16x16xf32>
    %cst_20 = arith.constant dense<0.000000e+00> : vector<16xf32>
    %30 = vector.multi_reduction <add>, %29, %cst_20 [1] : vector<16x16xf32> to vector<16xf32>
    %31 = vector.shape_cast %30 : vector<16xf32> to vector<16x1xf32>
    %32 = vector.broadcast %31 : vector<16x1xf32> to vector<16x16xf32>
    %33 = arith.divf %29, %32 : vector<16x16xf32>
    %cst_21 = arith.constant dense<0.000000e+00> : vector<16x32xf32>
    %34 = tpu.matmul %33, %23, %cst_21 {dimension_numbers = #tpu.dot_dimension_numbers<[1], [0], [0], [1], [0, 0, 1, 1], [], []>} : vector<16x16xf32>, vector<16x32xf32>, vector<16x32xf32> -> vector<16x32xf32>
    %c0_22 = arith.constant 0 : index
    %c0_23 = arith.constant 0 : index
    %35 = vector.load %arg8[%c0_22, %c0_23] : memref<128x128xf32, #tpu.memory_space<vmem>>, vector<32x128xf32>
    %cst_24 = arith.constant dense<0.000000e+00> : vector<16x128xf32>
    %36 = tpu.matmul %34, %35, %cst_24 {dimension_numbers = #tpu.dot_dimension_numbers<[1], [0], [0], [1], [0, 0, 1, 1], [], []>} : vector<16x32xf32>, vector<32x128xf32>, vector<16x128xf32> -> vector<16x128xf32>
    %37 = arith.addf %20, %36 : vector<16x128xf32>
    %38 = vector.extract_strided_slice %19 {offsets = [0, 32], sizes = [16, 32], strides = [1, 1]} : vector<16x128xf32> to vector<16x32xf32>
    %39 = vector.extract_strided_slice %12 {offsets = [0, 32], sizes = [16, 32], strides = [1, 1]} : vector<16x128xf32> to vector<16x32xf32>
    %40 = vector.extract_strided_slice %17 {offsets = [0, 32], sizes = [16, 32], strides = [1, 1]} : vector<16x128xf32> to vector<16x32xf32>
    %cst_25 = arith.constant dense<0.000000e+00> : vector<16x16xf32>
    %41 = tpu.matmul %38, %39, %cst_25 {dimension_numbers = #tpu.dot_dimension_numbers<[1], [1], [0], [0], [0, 0, 1, 0], [], []>} : vector<16x32xf32>, vector<16x32xf32>, vector<16x16xf32> -> vector<16x16xf32>
    %cst_26 = arith.constant dense<0xFF800000> : vector<16xf32>
    %42 = vector.multi_reduction <maximumf>, %41, %cst_26 [1] : vector<16x16xf32> to vector<16xf32>
    %43 = vector.shape_cast %42 : vector<16xf32> to vector<16x1xf32>
    %44 = vector.broadcast %43 : vector<16x1xf32> to vector<16x16xf32>
    %45 = arith.subf %41, %44 : vector<16x16xf32>
    %46 = math.exp %45 : vector<16x16xf32>
    %cst_27 = arith.constant dense<0.000000e+00> : vector<16xf32>
    %47 = vector.multi_reduction <add>, %46, %cst_27 [1] : vector<16x16xf32> to vector<16xf32>
    %48 = vector.shape_cast %47 : vector<16xf32> to vector<16x1xf32>
    %49 = vector.broadcast %48 : vector<16x1xf32> to vector<16x16xf32>
    %50 = arith.divf %46, %49 : vector<16x16xf32>
    %cst_28 = arith.constant dense<0.000000e+00> : vector<16x32xf32>
    %51 = tpu.matmul %50, %40, %cst_28 {dimension_numbers = #tpu.dot_dimension_numbers<[1], [0], [0], [1], [0, 0, 1, 1], [], []>} : vector<16x16xf32>, vector<16x32xf32>, vector<16x32xf32> -> vector<16x32xf32>
    %c32 = arith.constant 32 : index
    %c0_29 = arith.constant 0 : index
    %52 = vector.load %arg8[%c32, %c0_29] : memref<128x128xf32, #tpu.memory_space<vmem>>, vector<32x128xf32>
    %cst_30 = arith.constant dense<0.000000e+00> : vector<16x128xf32>
    %53 = tpu.matmul %51, %52, %cst_30 {dimension_numbers = #tpu.dot_dimension_numbers<[1], [0], [0], [1], [0, 0, 1, 1], [], []>} : vector<16x32xf32>, vector<32x128xf32>, vector<16x128xf32> -> vector<16x128xf32>
    %54 = arith.addf %37, %53 : vector<16x128xf32>
    %55 = vector.extract_strided_slice %19 {offsets = [0, 64], sizes = [16, 32], strides = [1, 1]} : vector<16x128xf32> to vector<16x32xf32>
    %56 = vector.extract_strided_slice %12 {offsets = [0, 64], sizes = [16, 32], strides = [1, 1]} : vector<16x128xf32> to vector<16x32xf32>
    %57 = vector.extract_strided_slice %17 {offsets = [0, 64], sizes = [16, 32], strides = [1, 1]} : vector<16x128xf32> to vector<16x32xf32>
    %cst_31 = arith.constant dense<0.000000e+00> : vector<16x16xf32>
    %58 = tpu.matmul %55, %56, %cst_31 {dimension_numbers = #tpu.dot_dimension_numbers<[1], [1], [0], [0], [0, 0, 1, 0], [], []>} : vector<16x32xf32>, vector<16x32xf32>, vector<16x16xf32> -> vector<16x16xf32>
    %cst_32 = arith.constant dense<0xFF800000> : vector<16xf32>
    %59 = vector.multi_reduction <maximumf>, %58, %cst_32 [1] : vector<16x16xf32> to vector<16xf32>
    %60 = vector.shape_cast %59 : vector<16xf32> to vector<16x1xf32>
    %61 = vector.broadcast %60 : vector<16x1xf32> to vector<16x16xf32>
    %62 = arith.subf %58, %61 : vector<16x16xf32>
    %63 = math.exp %62 : vector<16x16xf32>
    %cst_33 = arith.constant dense<0.000000e+00> : vector<16xf32>
    %64 = vector.multi_reduction <add>, %63, %cst_33 [1] : vector<16x16xf32> to vector<16xf32>
    %65 = vector.shape_cast %64 : vector<16xf32> to vector<16x1xf32>
    %66 = vector.broadcast %65 : vector<16x1xf32> to vector<16x16xf32>
    %67 = arith.divf %63, %66 : vector<16x16xf32>
    %cst_34 = arith.constant dense<0.000000e+00> : vector<16x32xf32>
    %68 = tpu.matmul %67, %57, %cst_34 {dimension_numbers = #tpu.dot_dimension_numbers<[1], [0], [0], [1], [0, 0, 1, 1], [], []>} : vector<16x16xf32>, vector<16x32xf32>, vector<16x32xf32> -> vector<16x32xf32>
    %c64 = arith.constant 64 : index
    %c0_35 = arith.constant 0 : index
    %69 = vector.load %arg8[%c64, %c0_35] : memref<128x128xf32, #tpu.memory_space<vmem>>, vector<32x128xf32>
    %cst_36 = arith.constant dense<0.000000e+00> : vector<16x128xf32>
    %70 = tpu.matmul %68, %69, %cst_36 {dimension_numbers = #tpu.dot_dimension_numbers<[1], [0], [0], [1], [0, 0, 1, 1], [], []>} : vector<16x32xf32>, vector<32x128xf32>, vector<16x128xf32> -> vector<16x128xf32>
    %71 = arith.addf %54, %70 : vector<16x128xf32>
    %72 = vector.extract_strided_slice %19 {offsets = [0, 96], sizes = [16, 32], strides = [1, 1]} : vector<16x128xf32> to vector<16x32xf32>
    %73 = vector.extract_strided_slice %12 {offsets = [0, 96], sizes = [16, 32], strides = [1, 1]} : vector<16x128xf32> to vector<16x32xf32>
    %74 = vector.extract_strided_slice %17 {offsets = [0, 96], sizes = [16, 32], strides = [1, 1]} : vector<16x128xf32> to vector<16x32xf32>
    %cst_37 = arith.constant dense<0.000000e+00> : vector<16x16xf32>
    %75 = tpu.matmul %72, %73, %cst_37 {dimension_numbers = #tpu.dot_dimension_numbers<[1], [1], [0], [0], [0, 0, 1, 0], [], []>} : vector<16x32xf32>, vector<16x32xf32>, vector<16x16xf32> -> vector<16x16xf32>
    %cst_38 = arith.constant dense<0xFF800000> : vector<16xf32>
    %76 = vector.multi_reduction <maximumf>, %75, %cst_38 [1] : vector<16x16xf32> to vector<16xf32>
    %77 = vector.shape_cast %76 : vector<16xf32> to vector<16x1xf32>
    %78 = vector.broadcast %77 : vector<16x1xf32> to vector<16x16xf32>
    %79 = arith.subf %75, %78 : vector<16x16xf32>
    %80 = math.exp %79 : vector<16x16xf32>
    %cst_39 = arith.constant dense<0.000000e+00> : vector<16xf32>
    %81 = vector.multi_reduction <add>, %80, %cst_39 [1] : vector<16x16xf32> to vector<16xf32>
    %82 = vector.shape_cast %81 : vector<16xf32> to vector<16x1xf32>
    %83 = vector.broadcast %82 : vector<16x1xf32> to vector<16x16xf32>
    %84 = arith.divf %80, %83 : vector<16x16xf32>
    %cst_40 = arith.constant dense<0.000000e+00> : vector<16x32xf32>
    %85 = tpu.matmul %84, %74, %cst_40 {dimension_numbers = #tpu.dot_dimension_numbers<[1], [0], [0], [1], [0, 0, 1, 1], [], []>} : vector<16x16xf32>, vector<16x32xf32>, vector<16x32xf32> -> vector<16x32xf32>
    %c96 = arith.constant 96 : index
    %c0_41 = arith.constant 0 : index
    %86 = vector.load %arg8[%c96, %c0_41] : memref<128x128xf32, #tpu.memory_space<vmem>>, vector<32x128xf32>
    %cst_42 = arith.constant dense<0.000000e+00> : vector<16x128xf32>
    %87 = tpu.matmul %85, %86, %cst_42 {dimension_numbers = #tpu.dot_dimension_numbers<[1], [0], [0], [1], [0, 0, 1, 1], [], []>} : vector<16x32xf32>, vector<32x128xf32>, vector<16x128xf32> -> vector<16x128xf32>
    %88 = arith.addf %71, %87 : vector<16x128xf32>
    %c0_43 = arith.constant 0 : index
    %c0_44 = arith.constant 0 : index
    %89 = vector.load %arg9[%c0_43, %c0_44] : memref<1x128xf32, #tpu.memory_space<vmem>>, vector<1x128xf32>
    %90 = vector.broadcast %89 : vector<1x128xf32> to vector<16x128xf32>
    %91 = arith.addf %88, %90 : vector<16x128xf32>
    %92 = arith.addf %91, %1 : vector<16x128xf32>
    %cst_45 = arith.constant dense<0.000000e+00> : vector<16xf32>
    %93 = vector.multi_reduction <add>, %92, %cst_45 [1] : vector<16x128xf32> to vector<16xf32>
    %94 = vector.shape_cast %93 : vector<16xf32> to vector<16x1xf32>
    %cst_46 = arith.constant 1.280000e+02 : f32
    %95 = vector.broadcast %cst_46 : f32 to vector<16x1xf32>
    %96 = arith.divf %94, %95 : vector<16x1xf32>
    %97 = vector.broadcast %96 : vector<16x1xf32> to vector<16x128xf32>
    %98 = arith.subf %92, %97 : vector<16x128xf32>
    %99 = arith.mulf %98, %98 : vector<16x128xf32>
    %cst_47 = arith.constant dense<0.000000e+00> : vector<16xf32>
    %100 = vector.multi_reduction <add>, %99, %cst_47 [1] : vector<16x128xf32> to vector<16xf32>
    %101 = vector.shape_cast %100 : vector<16xf32> to vector<16x1xf32>
    %cst_48 = arith.constant 1.280000e+02 : f32
    %102 = vector.broadcast %cst_48 : f32 to vector<16x1xf32>
    %103 = arith.divf %101, %102 : vector<16x1xf32>
    %104 = vector.broadcast %96 : vector<16x1xf32> to vector<16x128xf32>
    %105 = arith.subf %92, %104 : vector<16x128xf32>
    %cst_49 = arith.constant 9.99999974E-6 : f32
    %106 = vector.broadcast %cst_49 : f32 to vector<16x1xf32>
    %107 = arith.addf %103, %106 : vector<16x1xf32>
    %108 = math.rsqrt %107 : vector<16x1xf32>
    %109 = vector.broadcast %108 : vector<16x1xf32> to vector<16x128xf32>
    %110 = arith.mulf %105, %109 : vector<16x128xf32>
    %c0_50 = arith.constant 0 : index
    %c0_51 = arith.constant 0 : index
    %111 = vector.load %arg10[%c0_50, %c0_51] : memref<1x128xf32, #tpu.memory_space<vmem>>, vector<1x128xf32>
    %112 = vector.broadcast %111 : vector<1x128xf32> to vector<16x128xf32>
    %113 = arith.mulf %110, %112 : vector<16x128xf32>
    %c0_52 = arith.constant 0 : index
    %c0_53 = arith.constant 0 : index
    %114 = vector.load %arg11[%c0_52, %c0_53] : memref<1x128xf32, #tpu.memory_space<vmem>>, vector<1x128xf32>
    %115 = vector.broadcast %114 : vector<1x128xf32> to vector<16x128xf32>
    %116 = arith.addf %113, %115 : vector<16x128xf32>
    %c0_54 = arith.constant 0 : index
    %c0_55 = arith.constant 0 : index
    %c0_56 = arith.constant 0 : index
    %117 = vector.load %arg12[%c0_54, %c0_55, %c0_56] : memref<1x16x128xf32, #tpu.memory_space<vmem>>, vector<1x16x128xf32>
    %118 = vector.shape_cast %117 : vector<1x16x128xf32> to vector<16x128xf32>
    %119 = vector.shape_cast %116 : vector<16x128xf32> to vector<1x16x128xf32>
    tpu.vector_store %arg12[%c0_54, %c0_55, %c0_56], %119 {strides = array<i32>} : memref<1x16x128xf32, #tpu.memory_space<vmem>>, vector<1x16x128xf32>,
    return
  }
  func.func @transform_0(%arg0: i32) -> (i32, i32, i32) {
    %c0_i32 = arith.constant 0 : i32
    %c0_i32_0 = arith.constant 0 : i32
    %c0_i32_1 = arith.constant 0 : i32
    return %arg0, %c0_i32, %c0_i32_0 : i32, i32, i32
  }
  func.func @transform_1(%arg0: i32) -> (i32, i32) {
    %c0_i32 = arith.constant 0 : i32
    %c0_i32_0 = arith.constant 0 : i32
    %c0_i32_1 = arith.constant 0 : i32
    return %c0_i32, %c0_i32_0 : i32, i32
  }
  func.func @transform_2(%arg0: i32) -> (i32, i32) {
    %c0_i32 = arith.constant 0 : i32
    %c0_i32_0 = arith.constant 0 : i32
    %c0_i32_1 = arith.constant 0 : i32
    return %c0_i32, %c0_i32_0 : i32, i32
  }
  func.func @transform_3(%arg0: i32) -> (i32, i32) {
    %c0_i32 = arith.constant 0 : i32
    %c0_i32_0 = arith.constant 0 : i32
    %c0_i32_1 = arith.constant 0 : i32
    return %c0_i32, %c0_i32_0 : i32, i32
  }
  func.func @transform_4(%arg0: i32) -> (i32, i32) {
    %c0_i32 = arith.constant 0 : i32
    %c0_i32_0 = arith.constant 0 : i32
    %c0_i32_1 = arith.constant 0 : i32
    return %c0_i32, %c0_i32_0 : i32, i32
  }
  func.func @transform_5(%arg0: i32) -> (i32, i32) {
    %c0_i32 = arith.constant 0 : i32
    %c0_i32_0 = arith.constant 0 : i32
    %c0_i32_1 = arith.constant 0 : i32
    return %c0_i32, %c0_i32_0 : i32, i32
  }
  func.func @transform_6(%arg0: i32) -> (i32, i32) {
    %c0_i32 = arith.constant 0 : i32
    %c0_i32_0 = arith.constant 0 : i32
    %c0_i32_1 = arith.constant 0 : i32
    return %c0_i32, %c0_i32_0 : i32, i32
  }
  func.func @transform_7(%arg0: i32) -> (i32, i32) {
    %c0_i32 = arith.constant 0 : i32
    %c0_i32_0 = arith.constant 0 : i32
    %c0_i32_1 = arith.constant 0 : i32
    return %c0_i32, %c0_i32_0 : i32, i32
  }
  func.func @transform_8(%arg0: i32) -> (i32, i32) {
    %c0_i32 = arith.constant 0 : i32
    %c0_i32_0 = arith.constant 0 : i32
    %c0_i32_1 = arith.constant 0 : i32
    return %c0_i32, %c0_i32_0 : i32, i32
  }
  func.func @transform_9(%arg0: i32) -> (i32, i32) {
    %c0_i32 = arith.constant 0 : i32
    %c0_i32_0 = arith.constant 0 : i32
    %c0_i32_1 = arith.constant 0 : i32
    return %c0_i32, %c0_i32_0 : i32, i32
  }
  func.func @transform_10(%arg0: i32) -> (i32, i32) {
    %c0_i32 = arith.constant 0 : i32
    %c0_i32_0 = arith.constant 0 : i32
    %c0_i32_1 = arith.constant 0 : i32
    return %c0_i32, %c0_i32_0 : i32, i32
  }
  func.func @transform_11(%arg0: i32) -> (i32, i32, i32) {
    %c0_i32 = arith.constant 0 : i32
    %c0_i32_0 = arith.constant 0 : i32
    %c0_i32_1 = arith.constant 0 : i32
    return %arg0, %c0_i32, %c0_i32_0 : i32, i32, i32
  }
}

</mosaic_0001>

<llo_original>
// kernel: tpu_custom_call.1
$region0: #{tpu_custom_call.1}
  #allocation0 [shape = 'u32[]', space=smem, size = 0x4, offset = 0x4, fixed_abs, tag = 'smem constant byte address 0x4 - core index']
  #allocation1 [shape = 'u32[72,128]{1,0:T(1,128)}', space=vmem, size = 0x9000, scoped, tag = 'internal scratch']
  %s0 = inlined_call_operand.hbm [shape: f32[2,16,128], index: 0, kind: input, shape index: {}]
  %s1 = inlined_call_operand.hbm [shape: f32[128,128], index: 1, kind: input, shape index: {}]
  %s2 = inlined_call_operand.vmem [shape: f32[1,128], index: 2, kind: input, shape index: {}]
  %s3 = inlined_call_operand.hbm [shape: f32[128,128], index: 3, kind: input, shape index: {}]
  %s4 = inlined_call_operand.vmem [shape: f32[1,128], index: 4, kind: input, shape index: {}]
  %s5 = inlined_call_operand.hbm [shape: f32[128,128], index: 5, kind: input, shape index: {}]
  %s6 = inlined_call_operand.vmem [shape: f32[1,128], index: 6, kind: input, shape index: {}]
  %s7 = inlined_call_operand.hbm [shape: f32[128,128], index: 7, kind: input, shape index: {}]
  %s8 = inlined_call_operand.vmem [shape: f32[1,128], index: 8, kind: input, shape index: {}]
  %s9 = inlined_call_operand.vmem [shape: f32[1,128], index: 9, kind: input, shape index: {}]
  %s10 = inlined_call_operand.vmem [shape: f32[1,128], index: 10, kind: input, shape index: {}]
  %s11 = inlined_call_operand.hbm [shape: f32[2,16,128], index: 11, kind: output, shape index: {}]
  %s12 = sld [smem:[#allocation0]]
  $region97: #{tpu_custom_call.1} parent=0
    _
  %s14 = ssub.s32 1, %s12
  %s15 = scalar_select 0, %s14, %s12
  $region1: #{tpu_custom_call.1} parent=0
    #allocation2 [shape = 'u8[16384]{0}', space=vmem, size = 0x4000, scoped, tag = 'input window, operand 0']
    #allocation3 [shape = 's32[2]{0}', space=sflag, size = 0x8, scoped, tag = 'scoped memory for tpu_custom_call.1']
    #allocation4 [shape = 's32[2]{0}', space=sflag, size = 0x8, scoped, tag = 'scoped memory for tpu_custom_call.1']
    #allocation5 [shape = 'u8[65536]{0}', space=vmem, size = 0x10000, scoped, tag = 'input window, operand 1, single buffered']
    #allocation6 [shape = 's32[1]{0}', space=sflag, size = 0x4, scoped, tag = 'scoped memory for tpu_custom_call.1']
    #allocation7 [shape = 'u8[65536]{0}', space=vmem, size = 0x10000, scoped, tag = 'input window, operand 3, single buffered']
    #allocation8 [shape = 'u8[65536]{0}', space=vmem, size = 0x10000, scoped, tag = 'input window, operand 5, single buffered']
    #allocation9 [shape = 's32[1]{0}', space=sflag, size = 0x4, scoped, tag = 'scoped memory for tpu_custom_call.1']
    #allocation10 [shape = 'u8[65536]{0}', space=vmem, size = 0x10000, scoped, tag = 'input window, operand 7, single buffered']
    #allocation11 [shape = 'u8[16384]{0}', space=vmem, size = 0x4000, scoped, tag = 'output window, operand 0']
    %16 = vsyncpa [#allocation3], 0
    %s17 = scalar_lea.sflag [#allocation3], 1
    %18 = vsyncpa %s17, 0
    %19 = vsyncpa [#allocation6], 0
    %20 = vsyncpa [#allocation9], 0
    %21 = vsyncpa [#allocation4], 0
    %s22 = scalar_lea.sflag [#allocation4], 1
    %23 = vsyncpa %s22, 0
    loop: start=0, step=1, limit=4
    $region2: #{tpu_custom_call.1} parent=1 // loop_pre_header
      _
    $region3: #{tpu_custom_call.1} parent=1 // loop_header
      %s25 = sphi 0, %s29
      %p26 = scmp.ge.s32.totalorder %s25, 4
      %s35 = sphi 0, %s37
      %s38 = sphi 0, %s35
      %s39 = sphi 0, %s38
      %s55 = sphi 0, %s39
      %s59 = sphi 0, %s59
      %s61 = sphi 0, %s59
      %s62 = sphi 0, %s61
      %s76 = sphi 0, %s62
      %s80 = sphi 0, %s80
      %s82 = sphi 0, %s80
      %s83 = sphi 0, %s82
      %s97 = sphi 0, %s83
      %s101 = sphi 0, %s101
      %s103 = sphi 0, %s101
      %s104 = sphi 0, %s103
      %s118 = sphi 0, %s104
      %s122 = sphi 0, %s122
      %s124 = sphi 0, %s122
      %s125 = sphi 0, %s124
      %s139 = sphi 0, %s125
      %s143 = sphi 0, %s143
      %s145 = sphi 0, %s143
      %s146 = sphi 0, %s145
      %s160 = sphi 0, %s146
      %s164 = sphi 0, %s164
      %s166 = sphi 0, %s164
      %s167 = sphi 0, %s166
      %s181 = sphi 0, %s167
      %s185 = sphi 0, %s185
      %s187 = sphi 0, %s185
      %s188 = sphi 0, %s187
      %s202 = sphi 0, %s188
      %s206 = sphi 0, %s206
      %s208 = sphi 0, %s206
      %s209 = sphi 0, %s208
      %s223 = sphi 0, %s209
      %s227 = sphi 0, %s227
      %s229 = sphi 0, %s227
      %s230 = sphi 0, %s229
      %s244 = sphi 0, %s230
      %s248 = sphi 0, %s248
      %s250 = sphi 0, %s248
      %s251 = sphi 0, %s250
      %s265 = sphi 0, %s251
      %s271 = sphi 0, %s273
      %s274 = sphi 0, %s271
      %s275 = sphi 0, %s274
      %s291 = sphi 0, %s275
    $region4: #{tpu_custom_call.1} parent=1 // loop_header_branch
      %28 = sbr.rel (%p26) target = $region8
    $region5: #{tpu_custom_call.1} parent=1 // loop_body
      %s30 = ssub.s32 %s25, 1
      %s31 = ssub.s32 %s25, 2
      %s32 = sadd.s32 %s25, 1
      %s33 = ssub.s32 %s25, %s32
      %p34 = scmp.eq.s32.totalorder %s33, 0
      %s36 = sadd.s32 %s35, 1
      %s37 = scalar_select %p34, %s35, %s36
      %p40 = pneg %p34
      %p41 = scmp.eq.s32.totalorder %s25, 1
      %p42 = por %p40, %p41
      %p43 = scmp.ne.s32.totalorder %s35, %s38
      %p44 = scmp.eq.s32.totalorder %s25, 0
      %p45 = por %p43, %p44
      %p46 = scmp.ne.s32.totalorder %s35, %s38
      %p47 = scmp.eq.s32.totalorder %s30, 1
      %p48 = por %p46, %p47
      %p49 = scmp.ne.s32.totalorder %s38, %s39
      %p50 = scmp.eq.s32.totalorder %s30, 0
      %p51 = por %p49, %p50
      %p52 = scmp.ne.s32.totalorder %s38, %s39
      %p53 = scmp.eq.s32.totalorder %s31, 1
      %p54 = por %p52, %p53
      %p56 = scmp.ne.s32.totalorder %s39, %s55
      %p57 = scmp.eq.s32.totalorder %s31, 0
      %p58 = por %p56, %p57
      %s60 = sadd.s32 %s59, 1
      %p63 = scmp.eq.s32.totalorder %s25, 1
      %p64 = scmp.ne.s32.totalorder %s59, %s61
      %p65 = scmp.eq.s32.totalorder %s25, 0
      %p66 = por %p64, %p65
      %p67 = scmp.ne.s32.totalorder %s59, %s61
      %p68 = scmp.eq.s32.totalorder %s30, 1
      %p69 = por %p67, %p68
      %p70 = scmp.ne.s32.totalorder %s61, %s62
      %p71 = scmp.eq.s32.totalorder %s30, 0
      %p72 = por %p70, %p71
      %p73 = scmp.ne.s32.totalorder %s61, %s62
      %p74 = scmp.eq.s32.totalorder %s31, 1
      %p75 = por %p73, %p74
      %p77 = scmp.ne.s32.totalorder %s62, %s76
      %p78 = scmp.eq.s32.totalorder %s31, 0
      %p79 = por %p77, %p78
      %s81 = sadd.s32 %s80, 1
      %p84 = scmp.eq.s32.totalorder %s25, 1
      %p85 = scmp.ne.s32.totalorder %s80, %s82
      %p86 = scmp.eq.s32.totalorder %s25, 0
      %p87 = por %p85, %p86
      %p88 = scmp.ne.s32.totalorder %s80, %s82
      %p89 = scmp.eq.s32.totalorder %s30, 1
      %p90 = por %p88, %p89
      %p91 = scmp.ne.s32.totalorder %s82, %s83
      %p92 = scmp.eq.s32.totalorder %s30, 0
      %p93 = por %p91, %p92
      %p94 = scmp.ne.s32.totalorder %s82, %s83
      %p95 = scmp.eq.s32.totalorder %s31, 1
      %p96 = por %p94, %p95
      %p98 = scmp.ne.s32.totalorder %s83, %s97
      %p99 = scmp.eq.s32.totalorder %s31, 0
      %p100 = por %p98, %p99
      %s102 = sadd.s32 %s101, 1
      %p105 = scmp.eq.s32.totalorder %s25, 1
      %p106 = scmp.ne.s32.totalorder %s101, %s103
      %p107 = scmp.eq.s32.totalorder %s25, 0
      %p108 = por %p106, %p107
      %p109 = scmp.ne.s32.totalorder %s101, %s103
      %p110 = scmp.eq.s32.totalorder %s30, 1
      %p111 = por %p109, %p110
      %p112 = scmp.ne.s32.totalorder %s103, %s104
      %p113 = scmp.eq.s32.totalorder %s30, 0
      %p114 = por %p112, %p113
      %p115 = scmp.ne.s32.totalorder %s103, %s104
      %p116 = scmp.eq.s32.totalorder %s31, 1
      %p117 = por %p115, %p116
      %p119 = scmp.ne.s32.totalorder %s104, %s118
      %p120 = scmp.eq.s32.totalorder %s31, 0
      %p121 = por %p119, %p120
      %s123 = sadd.s32 %s122, 1
      %p126 = scmp.eq.s32.totalorder %s25, 1
      %p127 = scmp.ne.s32.totalorder %s122, %s124
      %p128 = scmp.eq.s32.totalorder %s25, 0
      %p129 = por %p127, %p128
      %p130 = scmp.ne.s32.totalorder %s122, %s124
      %p131 = scmp.eq.s32.totalorder %s30, 1
      %p132 = por %p130, %p131
      %p133 = scmp.ne.s32.totalorder %s124, %s125
      %p134 = scmp.eq.s32.totalorder %s30, 0
      %p135 = por %p133, %p134
      %p136 = scmp.ne.s32.totalorder %s124, %s125
      %p137 = scmp.eq.s32.totalorder %s31, 1
      %p138 = por %p136, %p137
      %p140 = scmp.ne.s32.totalorder %s125, %s139
      %p141 = scmp.eq.s32.totalorder %s31, 0
      %p142 = por %p140, %p141
      %s144 = sadd.s32 %s143, 1
      %p147 = scmp.eq.s32.totalorder %s25, 1
      %p148 = scmp.ne.s32.totalorder %s143, %s145
      %p149 = scmp.eq.s32.totalorder %s25, 0
      %p150 = por %p148, %p149
      %p151 = scmp.ne.s32.totalorder %s143, %s145
      %p152 = scmp.eq.s32.totalorder %s30, 1
      %p153 = por %p151, %p152
      %p154 = scmp.ne.s32.totalorder %s145, %s146
      %p155 = scmp.eq.s32.totalorder %s30, 0
      %p156 = por %p154, %p155
      %p157 = scmp.ne.s32.totalorder %s145, %s146
      %p158 = scmp.eq.s32.totalorder %s31, 1
      %p159 = por %p157, %p158
      %p161 = scmp.ne.s32.totalorder %s146, %s160
      %p162 = scmp.eq.s32.totalorder %s31, 0
      %p163 = por %p161, %p162
      %s165 = sadd.s32 %s164, 1
      %p168 = scmp.eq.s32.totalorder %s25, 1
      %p169 = scmp.ne.s32.totalorder %s164, %s166
      %p170 = scmp.eq.s32.totalorder %s25, 0
      %p171 = por %p169, %p170
      %p172 = scmp.ne.s32.totalorder %s164, %s166
      %p173 = scmp.eq.s32.totalorder %s30, 1
      %p174 = por %p172, %p173
      %p175 = scmp.ne.s32.totalorder %s166, %s167
      %p176 = scmp.eq.s32.totalorder %s30, 0
      %p177 = por %p175, %p176
      %p178 = scmp.ne.s32.totalorder %s166, %s167
      %p179 = scmp.eq.s32.totalorder %s31, 1
      %p180 = por %p178, %p179
      %p182 = scmp.ne.s32.totalorder %s167, %s181
      %p183 = scmp.eq.s32.totalorder %s31, 0
      %p184 = por %p182, %p183
      %s186 = sadd.s32 %s185, 1
      %p189 = scmp.eq.s32.totalorder %s25, 1
      %p190 = scmp.ne.s32.totalorder %s185, %s187
      %p191 = scmp.eq.s32.totalorder %s25, 0
      %p192 = por %p190, %p191
      %p193 = scmp.ne.s32.totalorder %s185, %s187
      %p194 = scmp.eq.s32.totalorder %s30, 1
      %p195 = por %p193, %p194
      %p196 = scmp.ne.s32.totalorder %s187, %s188
      %p197 = scmp.eq.s32.totalorder %s30, 0
      %p198 = por %p196, %p197
      %p199 = scmp.ne.s32.totalorder %s187, %s188
      %p200 = scmp.eq.s32.totalorder %s31, 1
      %p201 = por %p199, %p200
      %p203 = scmp.ne.s32.totalorder %s188, %s202
      %p204 = scmp.eq.s32.totalorder %s31, 0
      %p205 = por %p203, %p204
      %s207 = sadd.s32 %s206, 1
      %p210 = scmp.eq.s32.totalorder %s25, 1
      %p211 = scmp.ne.s32.totalorder %s206, %s208
      %p212 = scmp.eq.s32.totalorder %s25, 0
      %p213 = por %p211, %p212
      %p214 = scmp.ne.s32.totalorder %s206, %s208
      %p215 = scmp.eq.s32.totalorder %s30, 1
      %p216 = por %p214, %p215
      %p217 = scmp.ne.s32.totalorder %s208, %s209
      %p218 = scmp.eq.s32.totalorder %s30, 0
      %p219 = por %p217, %p218
      %p220 = scmp.ne.s32.totalorder %s208, %s209
      %p221 = scmp.eq.s32.totalorder %s31, 1
      %p222 = por %p220, %p221
      %p224 = scmp.ne.s32.totalorder %s209, %s223
      %p225 = scmp.eq.s32.totalorder %s31, 0
      %p226 = por %p224, %p225
      %s228 = sadd.s32 %s227, 1
      %p231 = scmp.eq.s32.totalorder %s25, 1
      %p232 = scmp.ne.s32.totalorder %s227, %s229
      %p233 = scmp.eq.s32.totalorder %s25, 0
      %p234 = por %p232, %p233
      %p235 = scmp.ne.s32.totalorder %s227, %s229
      %p236 = scmp.eq.s32.totalorder %s30, 1
      %p237 = por %p235, %p236
      %p238 = scmp.ne.s32.totalorder %s229, %s230
      %p239 = scmp.eq.s32.totalorder %s30, 0
      %p240 = por %p238, %p239
      %p241 = scmp.ne.s32.totalorder %s229, %s230
      %p242 = scmp.eq.s32.totalorder %s31, 1
      %p243 = por %p241, %p242
      %p245 = scmp.ne.s32.totalorder %s230, %s244
      %p246 = scmp.eq.s32.totalorder %s31, 0
      %p247 = por %p245, %p246
      %s249 = sadd.s32 %s248, 1
      %p252 = scmp.eq.s32.totalorder %s25, 1
      %p253 = scmp.ne.s32.totalorder %s248, %s250
      %p254 = scmp.eq.s32.totalorder %s25, 0
      %p255 = por %p253, %p254
      %p256 = scmp.ne.s32.totalorder %s248, %s250
      %p257 = scmp.eq.s32.totalorder %s30, 1
      %p258 = por %p256, %p257
      %p259 = scmp.ne.s32.totalorder %s250, %s251
      %p260 = scmp.eq.s32.totalorder %s30, 0
      %p261 = por %p259, %p260
      %p262 = scmp.ne.s32.totalorder %s250, %s251
      %p263 = scmp.eq.s32.totalorder %s31, 1
      %p264 = por %p262, %p263
      %p266 = scmp.ne.s32.totalorder %s251, %s265
      %p267 = scmp.eq.s32.totalorder %s31, 0
      %p268 = por %p266, %p267
      %s269 = ssub.s32 %s25, %s32
      %p270 = scmp.eq.s32.totalorder %s269, 0
      %s272 = sadd.s32 %s271, 1
      %s273 = scalar_select %p270, %s271, %s272
      %p276 = pneg %p270
      %p277 = scmp.eq.s32.totalorder %s25, 1
      %p278 = por %p276, %p277
      %p279 = scmp.ne.s32.totalorder %s271, %s274
      %p280 = scmp.eq.s32.totalorder %s25, 0
      %p281 = por %p279, %p280
      %p282 = scmp.ne.s32.totalorder %s271, %s274
      %p283 = scmp.eq.s32.totalorder %s30, 1
      %p284 = por %p282, %p283
      %p285 = scmp.ne.s32.totalorder %s274, %s275
      %p286 = scmp.eq.s32.totalorder %s30, 0
      %p287 = por %p285, %p286
      %p288 = scmp.ne.s32.totalorder %s274, %s275
      %p289 = scmp.eq.s32.totalorder %s31, 1
      %p290 = por %p288, %p289
      %p292 = scmp.ne.s32.totalorder %s275, %s291
      %p293 = scmp.eq.s32.totalorder %s31, 0
      %p294 = por %p292, %p293
      %p295 = scmp.le.s32.totalorder 1, %s25
      %p296 = scmp.lt.s32.totalorder %s25, 3
      %p297 = pnand %p295, %p296
      %p298 = pneg %p297
      // Predicated region
      $region9: #{tpu_custom_call.1} parent=5 // pred_check
        _
      $region10: #{tpu_custom_call.1} parent=5 // pred_check_branch
        %300 = sbr.rel (%p297) target = $region12
      $region11: #{tpu_custom_call.1} parent=5 // pred_region
        %s301 = ssub.s32 %s25, 1
        // Predicated region
        $region13: #{tpu_custom_call.1} parent=11 // pred_check
          %p302 = pneg %p72
        $region14: #{tpu_custom_call.1} parent=11 // pred_check_branch
          %304 = sbr.rel (%p302) target = $region16
        $region15: #{tpu_custom_call.1} parent=11 // pred_region
          %306 = vsyncadd [#allocation6], 0
          %s307 = sshll.u32 %s1, 4
          %s308 = int_to_ptr.hbm [resolvable:$true] %s307
          %s309 = sshll.u32 [#allocation5], 4
          %s310 = int_to_ptr.vmem [resolvable:$true] %s309
          %315 = dma.hbm_to_vmem [thread:$0]  %s308, 2048, %s310, [#allocation6], 128, 128, 8
        $region16: #{tpu_custom_call.1} parent=11 // pred_fallthru
          _
        // Predicated region
        $region17: #{tpu_custom_call.1} parent=11 // pred_check
          %p316 = pneg %p93
        $region18: #{tpu_custom_call.1} parent=11 // pred_check_branch
          %318 = sbr.rel (%p316) target = $region20
        $region19: #{tpu_custom_call.1} parent=11 // pred_region
          _
        $region20: #{tpu_custom_call.1} parent=11 // pred_fallthru
          _
        // Predicated region
        $region21: #{tpu_custom_call.1} parent=11 // pred_check
          %p319 = pneg %p114
        $region22: #{tpu_custom_call.1} parent=11 // pred_check_branch
          %321 = sbr.rel (%p319) target = $region24
        $region23: #{tpu_custom_call.1} parent=11 // pred_region
          %323 = vsyncadd [#allocation6], 0
          %s324 = sshll.u32 %s3, 4
          %s325 = int_to_ptr.hbm [resolvable:$true] %s324
          %s326 = sshll.u32 [#allocation7], 4
          %s327 = int_to_ptr.vmem [resolvable:$true] %s326
          %332 = dma.hbm_to_vmem [thread:$0]  %s325, 2048, %s327, [#allocation6], 128, 128, 8
        $region24: #{tpu_custom_call.1} parent=11 // pred_fallthru
          _
        // Predicated region
        $region25: #{tpu_custom_call.1} parent=11 // pred_check
          %p333 = pneg %p135
        $region26: #{tpu_custom_call.1} parent=11 // pred_check_branch
          %335 = sbr.rel (%p333) target = $region28
        $region27: #{tpu_custom_call.1} parent=11 // pred_region
          _
        $region28: #{tpu_custom_call.1} parent=11 // pred_fallthru
          _
        // Predicated region
        $region29: #{tpu_custom_call.1} parent=11 // pred_check
          %p336 = pneg %p156
        $region30: #{tpu_custom_call.1} parent=11 // pred_check_branch
          %338 = sbr.rel (%p336) target = $region32
        $region31: #{tpu_custom_call.1} parent=11 // pred_region
          %340 = vsyncadd [#allocation9], 0
          %s341 = sshll.u32 %s5, 4
          %s342 = int_to_ptr.hbm [resolvable:$true] %s341
          %s343 = sshll.u32 [#allocation8], 4
          %s344 = int_to_ptr.vmem [resolvable:$true] %s343
          %349 = dma.hbm_to_vmem [thread:$0]  %s342, 2048, %s344, [#allocation9], 128, 128, 8
        $region32: #{tpu_custom_call.1} parent=11 // pred_fallthru
          _
        // Predicated region
        $region33: #{tpu_custom_call.1} parent=11 // pred_check
          %p350 = pneg %p177
        $region34: #{tpu_custom_call.1} parent=11 // pred_check_branch
          %352 = sbr.rel (%p350) target = $region36
        $region35: #{tpu_custom_call.1} parent=11 // pred_region
          _
        $region36: #{tpu_custom_call.1} parent=11 // pred_fallthru
          _
        // Predicated region
        $region37: #{tpu_custom_call.1} parent=11 // pred_check
          %p353 = pneg %p198
        $region38: #{tpu_custom_call.1} parent=11 // pred_check_branch
          %355 = sbr.rel (%p353) target = $region40
        $region39: #{tpu_custom_call.1} parent=11 // pred_region
          %357 = vsyncadd [#allocation9], 0
          %s358 = sshll.u32 %s7, 4
          %s359 = int_to_ptr.hbm [resolvable:$true] %s358
          %s360 = sshll.u32 [#allocation10], 4
          %s361 = int_to_ptr.vmem [resolvable:$true] %s360
          %366 = dma.hbm_to_vmem [thread:$0]  %s359, 2048, %s361, [#allocation9], 128, 128, 8
        $region40: #{tpu_custom_call.1} parent=11 // pred_fallthru
          _
        // Predicated region
        $region41: #{tpu_custom_call.1} parent=11 // pred_check
          %p367 = pneg %p219
        $region42: #{tpu_custom_call.1} parent=11 // pred_check_branch
          %369 = sbr.rel (%p367) target = $region44
        $region43: #{tpu_custom_call.1} parent=11 // pred_region
          _
        $region44: #{tpu_custom_call.1} parent=11 // pred_fallthru
          _
        // Predicated region
        $region45: #{tpu_custom_call.1} parent=11 // pred_check
          %p370 = pneg %p240
        $region46: #{tpu_custom_call.1} parent=11 // pred_check_branch
          %372 = sbr.rel (%p370) target = $region48
        $region47: #{tpu_custom_call.1} parent=11 // pred_region
          _
        $region48: #{tpu_custom_call.1} parent=11 // pred_fallthru
          _
        // Predicated region
        $region49: #{tpu_custom_call.1} parent=11 // pred_check
          %p373 = pneg %p261
        $region50: #{tpu_custom_call.1} parent=11 // pred_check_branch
          %375 = sbr.rel (%p373) target = $region52
        $region51: #{tpu_custom_call.1} parent=11 // pred_region
          _
        $region52: #{tpu_custom_call.1} parent=11 // pred_fallthru
          _
      $region12: #{tpu_custom_call.1} parent=5 // pred_fallthru
        _
      %p376 = scmp.lt.s32.totalorder %s25, 2
      // Predicated region
      $region53: #{tpu_custom_call.1} parent=5 // pred_check
        %p377 = pneg %p376
      $region54: #{tpu_custom_call.1} parent=5 // pred_check_branch
        %379 = sbr.rel (%p377) target = $region56
      $region55: #{tpu_custom_call.1} parent=5 // pred_region
        // Predicated region
        $region57: #{tpu_custom_call.1} parent=55 // pred_check
          %p380 = pneg %p45
        $region58: #{tpu_custom_call.1} parent=55 // pred_check_branch
          %382 = sbr.rel (%p380) target = $region60
        $region59: #{tpu_custom_call.1} parent=55 // pred_region
          %s383 = sand.u32 %s35, 1
          %s384 = scalar_lea.sflag [#allocation3], %s383
          %s385 = sand.u32 %s35, 1
          %s386 = smul.addr %s385, 16
          %s387 = scalar_lea.vmem [#allocation2], %s386
          %389 = vsyncadd %s384, 0
          %s390 = smul.addr %s25, 2
          %s391 = smul.addr %s390, 8
          %s392 = scalar_lea.hbm %s0, %s391
          %s393 = sshll.u32 %s392, 4
          %s394 = int_to_ptr.hbm [resolvable:$true] %s393
          %s395 = sshll.u32 %s387, 4
          %s396 = int_to_ptr.vmem [resolvable:$true] %s395
          %401 = dma.hbm_to_vmem [thread:$0]  %s394, 256, %s396, %s384, 128, 128, 8
        $region60: #{tpu_custom_call.1} parent=55 // pred_fallthru
          _
      $region56: #{tpu_custom_call.1} parent=5 // pred_fallthru
        _
      %p402 = scmp.le.s32.totalorder 1, %s25
      %p403 = scmp.lt.s32.totalorder %s25, 3
      %p404 = pnand %p402, %p403
      %p405 = pneg %p404
      // Predicated region
      $region61: #{tpu_custom_call.1} parent=5 // pred_check
        _
      $region62: #{tpu_custom_call.1} parent=5 // pred_check_branch
        %407 = sbr.rel (%p404) target = $region64
      $region63: #{tpu_custom_call.1} parent=5 // pred_region
        %s408 = ssub.s32 %s25, 1
        %s409 = sand.u32 %s38, 1
        %s410 = scalar_lea.sflag [#allocation3], %s409
        %s411 = sand.u32 %s38, 1
        %s412 = smul.addr %s411, 16
        %s413 = scalar_lea.vmem [#allocation2], %s412
        // Predicated region
        $region65: #{tpu_custom_call.1} parent=63 // pred_check
          %p414 = pneg %p51
        $region66: #{tpu_custom_call.1} parent=63 // pred_check_branch
          %416 = sbr.rel (%p414) target = $region68
        $region67: #{tpu_custom_call.1} parent=63 // pred_region
          %418 = dma.done %s410, 256
        $region68: #{tpu_custom_call.1} parent=63 // pred_fallthru
          _
        // Predicated region
        $region69: #{tpu_custom_call.1} parent=63 // pred_check
          %p419 = pneg %p72
        $region70: #{tpu_custom_call.1} parent=63 // pred_check_branch
          %421 = sbr.rel (%p419) target = $region72
        $region71: #{tpu_custom_call.1} parent=63 // pred_region
          %423 = dma.done [#allocation6], 2048
        $region72: #{tpu_custom_call.1} parent=63 // pred_fallthru
          _
        // Predicated region
        $region73: #{tpu_custom_call.1} parent=63 // pred_check
          %p424 = pneg %p114
        $region74: #{tpu_custom_call.1} parent=63 // pred_check_branch
          %426 = sbr.rel (%p424) target = $region76
        $region75: #{tpu_custom_call.1} parent=63 // pred_region
          %428 = dma.done [#allocation6], 2048
        $region76: #{tpu_custom_call.1} parent=63 // pred_fallthru
          _
        // Predicated region
        $region77: #{tpu_custom_call.1} parent=63 // pred_check
          %p429 = pneg %p156
        $region78: #{tpu_custom_call.1} parent=63 // pred_check_branch
          %431 = sbr.rel (%p429) target = $region80
        $region79: #{tpu_custom_call.1} parent=63 // pred_region
          %433 = dma.done [#allocation9], 2048
        $region80: #{tpu_custom_call.1} parent=63 // pred_fallthru
          _
        // Predicated region
        $region81: #{tpu_custom_call.1} parent=63 // pred_check
          %p434 = pneg %p198
        $region82: #{tpu_custom_call.1} parent=63 // pred_check_branch
          %436 = sbr.rel (%p434) target = $region84
        $region83: #{tpu_custom_call.1} parent=63 // pred_region
          %438 = dma.done [#allocation9], 2048
        $region84: #{tpu_custom_call.1} parent=63 // pred_fallthru
          _
        %s439 = sand.u32 %s38, 1
        %s440 = scalar_lea.sflag [#allocation3], %s439
        %s441 = sand.u32 %s38, 1
        %s442 = smul.addr %s441, 16
        %s443 = scalar_lea.vmem [#allocation2], %s442
        %p444 = pneg %p51
        %p445 = pneg %p48
        %p446 = pneg %p72
        %p447 = pneg %p69
        %p448 = pneg %p93
        %p449 = pneg %p90
        %p450 = pneg %p114
        %p451 = pneg %p111
        %p452 = pneg %p135
        %p453 = pneg %p132
        %p454 = pneg %p156
        %p455 = pneg %p153
        %p456 = pneg %p177
        %p457 = pneg %p174
        %p458 = pneg %p198
        %p459 = pneg %p195
        %p460 = pneg %p219
        %p461 = pneg %p216
        %p462 = pneg %p240
        %p463 = pneg %p237
        %p464 = pneg %p261
        %p465 = pneg %p258
        %p466 = pneg %p287
        %p467 = pneg %p284
        %s468 = sand.u32 %s274, 1
        %s469 = scalar_lea.sflag [#allocation4], %s468
        %s470 = sand.u32 %s274, 1
        %s471 = smul.addr %s470, 16
        %s472 = scalar_lea.vmem [#allocation11], %s471
        %v473 = vld [vmem:[%s413] sm:$0xff]
        %v474 = vld [vmem:[%s413 + $0x8] sm:$0xff]
        %v475 = vadd.f32 %v473, %v473
        %v476 = vadd.f32 %v474, %v474
        %v477 = vld [vmem:[#allocation5] sm:$0xff]
        %v478 = vld [vmem:[#allocation5 + $0x8] sm:$0xff]
        %v479 = vld [vmem:[#allocation5 + $0x10] sm:$0xff]
        %v480 = vld [vmem:[#allocation5 + $0x18] sm:$0xff]
        %v481 = vld [vmem:[#allocation5 + $0x20] sm:$0xff]
        %v482 = vld [vmem:[#allocation5 + $0x28] sm:$0xff]
        %v483 = vld [vmem:[#allocation5 + $0x30] sm:$0xff]
        %v484 = vld [vmem:[#allocation5 + $0x38] sm:$0xff]
        %v485 = vld [vmem:[#allocation5 + $0x40] sm:$0xff]
        %v486 = vld [vmem:[#allocation5 + $0x48] sm:$0xff]
        %v487 = vld [vmem:[#allocation5 + $0x50] sm:$0xff]
        %v488 = vld [vmem:[#allocation5 + $0x58] sm:$0xff]
        %v489 = vld [vmem:[#allocation5 + $0x60] sm:$0xff]
        %v490 = vld [vmem:[#allocation5 + $0x68] sm:$0xff]
        %v491 = vld [vmem:[#allocation5 + $0x70] sm:$0xff]
        %v492 = vld [vmem:[#allocation5 + $0x78] sm:$0xff]
        %v493 = vld [vmem:[%s2] sm:$0x1]
        %v495 = vperm.slane %v493, 0
        %497 = vmatpush.msra.mxu0 %v492
        %498 = vmatpush.msra.mxu0 %v491
        %499 = vmatpush.msra.mxu0 %v490
        %500 = vmatpush.msra.mxu0 %v489
        %501 = vmatpush.msra.mxu0 %v488
        %502 = vmatpush.msra.mxu0 %v487
        %503 = vmatpush.msra.mxu0 %v486
        %504 = vmatpush.msra.mxu0 %v485
        %505 = vmatpush.msra.mxu0 %v484
        %506 = vmatpush.msra.mxu0 %v483
        %507 = vmatpush.msra.mxu0 %v482
        %508 = vmatpush.msra.mxu0 %v481
        %509 = vmatpush.msra.mxu0 %v480
        %510 = vmatpush.msra.mxu0 %v479
        %511 = vmatpush.msra.mxu0 %v478
        %512 = vmatpush.msra.mxu0 %v477
        %513 = vmatmul.f32.gmra.mxu0 %v475
        %v514 = vpop.f32.mrf.mxu0
        %v515 = vadd.f32 %v495, %v514
        %516 = vmatmul.f32.gmra.mxu0 %v476
        %v517 = vpop.f32.mrf.mxu0
        %v518 = vadd.f32 %v495, %v517
        %519 = vdwg.mxu0
        %v520 = vld [vmem:[#allocation7] sm:$0xff]
        %v521 = vld [vmem:[#allocation7 + $0x8] sm:$0xff]
        %v522 = vld [vmem:[#allocation7 + $0x10] sm:$0xff]
        %v523 = vld [vmem:[#allocation7 + $0x18] sm:$0xff]
        %v524 = vld [vmem:[#allocation7 + $0x20] sm:$0xff]
        %v525 = vld [vmem:[#allocation7 + $0x28] sm:$0xff]
        %v526 = vld [vmem:[#allocation7 + $0x30] sm:$0xff]
        %v527 = vld [vmem:[#allocation7 + $0x38] sm:$0xff]
        %v528 = vld [vmem:[#allocation7 + $0x40] sm:$0xff]
        %v529 = vld [vmem:[#allocation7 + $0x48] sm:$0xff]
        %v530 = vld [vmem:[#allocation7 + $0x50] sm:$0xff]
        %v531 = vld [vmem:[#allocation7 + $0x58] sm:$0xff]
        %v532 = vld [vmem:[#allocation7 + $0x60] sm:$0xff]
        %v533 = vld [vmem:[#allocation7 + $0x68] sm:$0xff]
        %v534 = vld [vmem:[#allocation7 + $0x70] sm:$0xff]
        %v535 = vld [vmem:[#allocation7 + $0x78] sm:$0xff]
        %v536 = vld [vmem:[%s4] sm:$0x1]
        %v538 = vperm.slane %v536, 0
        %540 = vmatpush.msra.mxu0 %v535
        %541 = vmatpush.msra.mxu0 %v534
        %542 = vmatpush.msra.mxu0 %v533
        %543 = vmatpush.msra.mxu0 %v532
        %544 = vmatpush.msra.mxu0 %v531
        %545 = vmatpush.msra.mxu0 %v530
        %546 = vmatpush.msra.mxu0 %v529
        %547 = vmatpush.msra.mxu0 %v528
        %548 = vmatpush.msra.mxu0 %v527
        %549 = vmatpush.msra.mxu0 %v526
        %550 = vmatpush.msra.mxu0 %v525
        %551 = vmatpush.msra.mxu0 %v524
        %552 = vmatpush.msra.mxu0 %v523
        %553 = vmatpush.msra.mxu0 %v522
        %554 = vmatpush.msra.mxu0 %v521
        %555 = vmatpush.msra.mxu0 %v520
        %556 = vmatmul.f32.gmra.mxu0 %v475
        %v557 = vpop.f32.mrf.mxu0
        %v558 = vadd.f32 %v538, %v557
        %559 = vmatmul.f32.gmra.mxu0 %v476
        %v560 = vpop.f32.mrf.mxu0
        %v561 = vadd.f32 %v538, %v560
        %562 = vdwg.mxu0
        %v563 = vld [vmem:[#allocation8] sm:$0xff]
        %v564 = vld [vmem:[#allocation8 + $0x8] sm:$0xff]
        %v565 = vld [vmem:[#allocation8 + $0x10] sm:$0xff]
        %v566 = vld [vmem:[#allocation8 + $0x18] sm:$0xff]
        %v567 = vld [vmem:[#allocation8 + $0x20] sm:$0xff]
        %v568 = vld [vmem:[#allocation8 + $0x28] sm:$0xff]
        %v569 = vld [vmem:[#allocation8 + $0x30] sm:$0xff]
        %v570 = vld [vmem:[#allocation8 + $0x38] sm:$0xff]
        %v571 = vld [vmem:[#allocation8 + $0x40] sm:$0xff]
        %v572 = vld [vmem:[#allocation8 + $0x48] sm:$0xff]
        %v573 = vld [vmem:[#allocation8 + $0x50] sm:$0xff]
        %v574 = vld [vmem:[#allocation8 + $0x58] sm:$0xff]
        %v575 = vld [vmem:[#allocation8 + $0x60] sm:$0xff]
        %v576 = vld [vmem:[#allocation8 + $0x68] sm:$0xff]
        %v577 = vld [vmem:[#allocation8 + $0x70] sm:$0xff]
        %v578 = vld [vmem:[#allocation8 + $0x78] sm:$0xff]
        %v579 = vld [vmem:[%s6] sm:$0x1]
        %v581 = vperm.slane %v579, 0
        %583 = vmatpush.msra.mxu0 %v578
        %584 = vmatpush.msra.mxu0 %v577
        %585 = vmatpush.msra.mxu0 %v576
        %586 = vmatpush.msra.mxu0 %v575
        %587 = vmatpush.msra.mxu0 %v574
        %588 = vmatpush.msra.mxu0 %v573
        %589 = vmatpush.msra.mxu0 %v572
        %590 = vmatpush.msra.mxu0 %v571
        %591 = vmatpush.msra.mxu0 %v570
        %592 = vmatpush.msra.mxu0 %v569
        %593 = vmatpush.msra.mxu0 %v568
        %594 = vmatpush.msra.mxu0 %v567
        %595 = vmatpush.msra.mxu0 %v566
        %596 = vmatpush.msra.mxu0 %v565
        %597 = vmatpush.msra.mxu0 %v564
        %598 = vmatpush.msra.mxu0 %v563
        %599 = vmatmul.f32.gmra.mxu0 %v473
        %v600 = vpop.f32.mrf.mxu0
        %v601 = vadd.f32 %v581, %v600
        %602 = vmatmul.f32.gmra.mxu0 %v474
        %v603 = vpop.f32.mrf.mxu0
        %v604 = vadd.f32 %v581, %v603
        %605 = vdwg.mxu0
        %v606 = vmul.f32 %v515, 0.17677669
        %v607 = vmul.f32 %v518, 0.17677669
        %vm608 = vcmask 261120
        %v610 = vsel %vm608, %v606, 0
        %v613 = vsel %vm608, %v607, 0
        %v616 = vsel %vm608, %v558, 0
        %v619 = vsel %vm608, %v561, 0
        %621 = vmatpush.xpose.msra.mxu0 0.0
        %622 = vmatpush.xpose.msra.mxu0 0.0
        %623 = vmatpush.xpose.msra.mxu0 0.0
        %624 = vmatpush.xpose.msra.mxu0 0.0
        %625 = vmatpush.xpose.msra.mxu0 0.0
        %626 = vmatpush.xpose.msra.mxu0 0.0
        %627 = vmatpush.xpose.msra.mxu0 0.0
        %628 = vmatpush.xpose.msra.mxu0 0.0
        %629 = vmatpush.xpose.msra.mxu0 0.0
        %630 = vmatpush.xpose.msra.mxu0 0.0
        %631 = vmatpush.xpose.msra.mxu0 0.0
        %632 = vmatpush.xpose.msra.mxu0 0.0
        %633 = vmatpush.xpose.msra.mxu0 0.0
        %634 = vmatpush.xpose.msra.mxu0 0.0
        %635 = vmatpush.xpose.msra.mxu0 %v619
        %636 = vmatpush.xpose.msra.mxu0 %v616
        %637 = vmatmul.f32.gmra.mxu0 %v610
        %v638 = vpop.f32.mrf.mxu0
        %v639 = vadd.f32 0.0, %v638
        %640 = vmatmul.f32.gmra.mxu0 %v613
        %v641 = vpop.f32.mrf.mxu0
        %v642 = vadd.f32 0.0, %v641
        %643 = vdwg.mxu0
        %vm644 = vcmask 130048
        %v645 = vsel %vm644, %v639, -inf
        %646 = vmax.xlane.f32.xlu0 %v645
        %v647 = vpop.xlane.xlu0 %646
        %v648 = vsel %vm644, %v642, -inf
        %649 = vmax.xlane.f32.xlu0 %v648
        %v650 = vpop.xlane.xlu0 %649
        %v651 = vsub.f32 %v639, %v647
        %v652 = vsub.f32 %v642, %v650
        %v653 = vmul.f32 %v651, 1.442695
        %v654 = vpow.pop %v653
        %v655 = vmul.f32 %v652, 1.442695
        %v656 = vpow.pop %v655
        %v657 = vsel %vm644, %v654, 0.0
        %658 = vadd.xlane.f32.xlu0 %v657
        %v659 = vpop.xlane.xlu0 %658
        %v660 = vsel %vm644, %v656, 0.0
        %661 = vadd.xlane.f32.xlu0 %v660
        %v662 = vpop.xlane.xlu0 %661
        %v663 = vrcp.pop %v659
        %v664 = vmul.f32 %v659, %v663
        %v665 = vsub.f32 1.0, %v664
        %v666 = vmul.f32 %v663, %v665
        %v667 = vadd.f32 %v663, %v666
        %vm668 = vweird.f32 %v659
        %vm669 = vweird.f32 %v663
        %vm670 = vmor %vm668, %vm669
        %v671 = vsel %vm670, %v663, %v667
        %v672 = vand.u32 2147483647, %v659
        %vm673 = vcmp.eq.f32.partialorder %v672, 8.507059e+37
        %v674 = vand.u32 %v659, 2147483648
        %v675 = vor.u32 1.1754944e-38, %v674
        %v676 = vsel %vm673, %v675, %v671
        %v677 = vmul.f32 %v654, %v676
        %v678 = vrcp.pop %v662
        %v679 = vmul.f32 %v662, %v678
        %v680 = vsub.f32 1.0, %v679
        %v681 = vmul.f32 %v678, %v680
        %v682 = vadd.f32 %v678, %v681
        %vm683 = vweird.f32 %v662
        %vm684 = vweird.f32 %v678
        %vm685 = vmor %vm683, %vm684
        %v686 = vsel %vm685, %v678, %v682
        %v687 = vand.u32 2147483647, %v662
        %vm688 = vcmp.eq.f32.partialorder %v687, 8.507059e+37
        %v689 = vand.u32 %v662, 2147483648
        %v690 = vor.u32 1.1754944e-38, %v689
        %v691 = vsel %vm688, %v690, %v686
        %v692 = vmul.f32 %v656, %v691
        %v694 = vsel %vm644, %v677, 0
        %v697 = vsel %vm644, %v692, 0
        %699 = vmatpush.msra.mxu0 0.0
        %700 = vmatpush.msra.mxu0 0.0
        %701 = vmatpush.msra.mxu0 0.0
        %702 = vmatpush.msra.mxu0 0.0
        %703 = vmatpush.msra.mxu0 0.0
        %704 = vmatpush.msra.mxu0 0.0
        %705 = vmatpush.msra.mxu0 0.0
        %706 = vmatpush.msra.mxu0 0.0
        %707 = vmatpush.msra.mxu0 0.0
        %708 = vmatpush.msra.mxu0 0.0
        %709 = vmatpush.msra.mxu0 0.0
        %710 = vmatpush.msra.mxu0 0.0
        %711 = vmatpush.msra.mxu0 0.0
        %712 = vmatpush.msra.mxu0 0.0
        %713 = vmatpush.msra.mxu0 %v604
        %714 = vmatpush.msra.mxu0 %v601
        %715 = vmatmul.f32.gmra.mxu0 %v694
        %v716 = vpop.f32.mrf.mxu0
        %v717 = vadd.f32 0.0, %v716
        %718 = vmatmul.f32.gmra.mxu0 %v697
        %v719 = vpop.f32.mrf.mxu0
        %v720 = vadd.f32 0.0, %v719
        %721 = vdwg.mxu0
        %v722 = vld [vmem:[#allocation10] sm:$0xff]
        %v723 = vld [vmem:[#allocation10 + $0x8] sm:$0xff]
        %v724 = vld [vmem:[#allocation10 + $0x10] sm:$0xff]
        %v725 = vld [vmem:[#allocation10 + $0x18] sm:$0xff]
        %726 = vrot.lane.b32.xlu0 %v606, 96
        %v727 = vpop.permute.xlu0 %726
        %728 = vrot.lane.b32.xlu0 %v607, 96
        %v729 = vpop.permute.xlu0 %728
        %730 = vrot.lane.b32.xlu0 %v558, 96
        %v731 = vpop.permute.xlu0 %730
        %732 = vrot.lane.b32.xlu0 %v561, 96
        %v733 = vpop.permute.xlu0 %732
        %v734 = vsel %vm608, %v727, 0
        %v736 = vsel %vm608, %v729, 0
        %v738 = vsel %vm608, %v731, 0
        %v740 = vsel %vm608, %v733, 0
        %742 = vmatpush.xpose.msra.mxu0 0.0
        %743 = vmatpush.xpose.msra.mxu0 0.0
        %744 = vmatpush.xpose.msra.mxu0 0.0
        %745 = vmatpush.xpose.msra.mxu0 0.0
        %746 = vmatpush.xpose.msra.mxu0 0.0
        %747 = vmatpush.xpose.msra.mxu0 0.0
        %748 = vmatpush.xpose.msra.mxu0 0.0
        %749 = vmatpush.xpose.msra.mxu0 0.0
        %750 = vmatpush.xpose.msra.mxu0 0.0
        %751 = vmatpush.xpose.msra.mxu0 0.0
        %752 = vmatpush.xpose.msra.mxu0 0.0
        %753 = vmatpush.xpose.msra.mxu0 0.0
        %754 = vmatpush.xpose.msra.mxu0 0.0
        %755 = vmatpush.xpose.msra.mxu0 0.0
        %756 = vmatpush.xpose.msra.mxu0 %v740
        %757 = vmatpush.xpose.msra.mxu0 %v738
        %758 = vmatmul.f32.gmra.mxu0 %v734
        %v759 = vpop.f32.mrf.mxu0
        %v760 = vadd.f32 0.0, %v759
        %761 = vmatmul.f32.gmra.mxu0 %v736
        %v762 = vpop.f32.mrf.mxu0
        %v763 = vadd.f32 0.0, %v762
        %764 = vdwg.mxu0
        %v765 = vsel %vm644, %v760, -inf
        %766 = vmax.xlane.f32.xlu0 %v765
        %v767 = vpop.xlane.xlu0 %766
        %v768 = vsel %vm644, %v763, -inf
        %769 = vmax.xlane.f32.xlu0 %v768
        %v770 = vpop.xlane.xlu0 %769
        %v771 = vsub.f32 %v760, %v767
        %v772 = vsub.f32 %v763, %v770
        %v773 = vmul.f32 %v771, 1.442695
        %v774 = vpow.pop %v773
        %v775 = vmul.f32 %v772, 1.442695
        %v776 = vpow.pop %v775
        %v777 = vsel %vm644, %v774, 0.0
        %778 = vadd.xlane.f32.xlu0 %v777
        %v779 = vpop.xlane.xlu0 %778
        %v780 = vsel %vm644, %v776, 0.0
        %781 = vadd.xlane.f32.xlu0 %v780
        %v782 = vpop.xlane.xlu0 %781
        %v783 = vrcp.pop %v779
        %v784 = vmul.f32 %v779, %v783
        %v785 = vsub.f32 1.0, %v784
        %v786 = vmul.f32 %v783, %v785
        %v787 = vadd.f32 %v783, %v786
        %vm788 = vweird.f32 %v779
        %vm789 = vweird.f32 %v783
        %vm790 = vmor %vm788, %vm789
        %v791 = vsel %vm790, %v783, %v787
        %v792 = vand.u32 2147483647, %v779
        %vm793 = vcmp.eq.f32.partialorder %v792, 8.507059e+37
        %v794 = vand.u32 %v779, 2147483648
        %v795 = vor.u32 1.1754944e-38, %v794
        %v796 = vsel %vm793, %v795, %v791
        %v797 = vmul.f32 %v774, %v796
        %v798 = vrcp.pop %v782
        %v799 = vmul.f32 %v782, %v798
        %v800 = vsub.f32 1.0, %v799
        %v801 = vmul.f32 %v798, %v800
        %v802 = vadd.f32 %v798, %v801
        %vm803 = vweird.f32 %v782
        %vm804 = vweird.f32 %v798
        %vm805 = vmor %vm803, %vm804
        %v806 = vsel %vm805, %v798, %v802
        %v807 = vand.u32 2147483647, %v782
        %vm808 = vcmp.eq.f32.partialorder %v807, 8.507059e+37
        %v809 = vand.u32 %v782, 2147483648
        %v810 = vor.u32 1.1754944e-38, %v809
        %v811 = vsel %vm808, %v810, %v806
        %v812 = vmul.f32 %v776, %v811
        %815 = vrot.lane.b32.xlu0 %v601, 96
        %v816 = vpop.permute.xlu0 %815
        %817 = vrot.lane.b32.xlu0 %v604, 96
        %v818 = vpop.permute.xlu0 %817
        %v822 = vsel %vm644, %v797, 0
        %v825 = vsel %vm644, %v812, 0
        %827 = vmatpush.msra.mxu0 0.0
        %828 = vmatpush.msra.mxu0 0.0
        %829 = vmatpush.msra.mxu0 0.0
        %830 = vmatpush.msra.mxu0 0.0
        %831 = vmatpush.msra.mxu0 0.0
        %832 = vmatpush.msra.mxu0 0.0
        %833 = vmatpush.msra.mxu0 0.0
        %834 = vmatpush.msra.mxu0 0.0
        %835 = vmatpush.msra.mxu0 0.0
        %836 = vmatpush.msra.mxu0 0.0
        %837 = vmatpush.msra.mxu0 0.0
        %838 = vmatpush.msra.mxu0 0.0
        %839 = vmatpush.msra.mxu0 0.0
        %840 = vmatpush.msra.mxu0 0.0
        %841 = vmatpush.msra.mxu0 %v818
        %842 = vmatpush.msra.mxu0 %v816
        %843 = vmatmul.f32.gmra.mxu0 %v822
        %v844 = vpop.f32.mrf.mxu0
        %v845 = vadd.f32 0.0, %v844
        %846 = vmatmul.f32.gmra.mxu0 %v825
        %v847 = vpop.f32.mrf.mxu0
        %v848 = vadd.f32 0.0, %v847
        %849 = vdwg.mxu0
        %v850 = vld [vmem:[#allocation10 + $0x20] sm:$0xff]
        %v851 = vld [vmem:[#allocation10 + $0x28] sm:$0xff]
        %v852 = vld [vmem:[#allocation10 + $0x30] sm:$0xff]
        %v853 = vld [vmem:[#allocation10 + $0x38] sm:$0xff]
        %v855 = vsel %vm608, %v845, 0
        %v858 = vsel %vm608, %v848, 0
        %860 = vmatpush.msra.mxu0 0.0
        %861 = vmatpush.msra.mxu0 0.0
        %862 = vmatpush.msra.mxu0 0.0
        %863 = vmatpush.msra.mxu0 0.0
        %864 = vmatpush.msra.mxu0 0.0
        %865 = vmatpush.msra.mxu0 0.0
        %866 = vmatpush.msra.mxu0 0.0
        %867 = vmatpush.msra.mxu0 0.0
        %868 = vmatpush.msra.mxu0 0.0
        %869 = vmatpush.msra.mxu0 0.0
        %870 = vmatpush.msra.mxu0 0.0
        %871 = vmatpush.msra.mxu0 0.0
        %872 = vmatpush.msra.mxu0 %v853
        %873 = vmatpush.msra.mxu0 %v852
        %874 = vmatpush.msra.mxu0 %v851
        %875 = vmatpush.msra.mxu0 %v850
        %876 = vmatmul.f32.gmra.mxu0 %v855
        %v877 = vpop.f32.mrf.mxu0
        %v878 = vadd.f32 0.0, %v877
        %879 = vmatmul.f32.gmra.mxu0 %v858
        %v880 = vpop.f32.mrf.mxu0
        %v881 = vadd.f32 0.0, %v880
        %882 = vdwg.mxu0
        %v884 = vsel %vm608, %v717, 0
        %v887 = vsel %vm608, %v720, 0
        %889 = vmatpush.msra.mxu0 0.0
        %890 = vmatpush.msra.mxu0 0.0
        %891 = vmatpush.msra.mxu0 0.0
        %892 = vmatpush.msra.mxu0 0.0
        %893 = vmatpush.msra.mxu0 0.0
        %894 = vmatpush.msra.mxu0 0.0
        %895 = vmatpush.msra.mxu0 0.0
        %896 = vmatpush.msra.mxu0 0.0
        %897 = vmatpush.msra.mxu0 0.0
        %898 = vmatpush.msra.mxu0 0.0
        %899 = vmatpush.msra.mxu0 0.0
        %900 = vmatpush.msra.mxu0 0.0
        %901 = vmatpush.msra.mxu0 %v725
        %902 = vmatpush.msra.mxu0 %v724
        %903 = vmatpush.msra.mxu0 %v723
        %904 = vmatpush.msra.mxu0 %v722
        %905 = vmatmul.f32.gmra.mxu0 %v884
        %v906 = vpop.f32.mrf.mxu0
        %v907 = vadd.f32 %v878, %v906
        %908 = vmatmul.f32.gmra.mxu0 %v887
        %v909 = vpop.f32.mrf.mxu0
        %v910 = vadd.f32 %v881, %v909
        %911 = vdwg.mxu0
        %912 = vrot.lane.b32.xlu0 %v606, 64
        %v913 = vpop.permute.xlu0 %912
        %914 = vrot.lane.b32.xlu0 %v607, 64
        %v915 = vpop.permute.xlu0 %914
        %916 = vrot.lane.b32.xlu0 %v558, 64
        %v917 = vpop.permute.xlu0 %916
        %918 = vrot.lane.b32.xlu0 %v561, 64
        %v919 = vpop.permute.xlu0 %918
        %v920 = vsel %vm608, %v913, 0
        %v922 = vsel %vm608, %v915, 0
        %v924 = vsel %vm608, %v917, 0
        %v926 = vsel %vm608, %v919, 0
        %928 = vmatpush.xpose.msra.mxu0 0.0
        %929 = vmatpush.xpose.msra.mxu0 0.0
        %930 = vmatpush.xpose.msra.mxu0 0.0
        %931 = vmatpush.xpose.msra.mxu0 0.0
        %932 = vmatpush.xpose.msra.mxu0 0.0
        %933 = vmatpush.xpose.msra.mxu0 0.0
        %934 = vmatpush.xpose.msra.mxu0 0.0
        %935 = vmatpush.xpose.msra.mxu0 0.0
        %936 = vmatpush.xpose.msra.mxu0 0.0
        %937 = vmatpush.xpose.msra.mxu0 0.0
        %938 = vmatpush.xpose.msra.mxu0 0.0
        %939 = vmatpush.xpose.msra.mxu0 0.0
        %940 = vmatpush.xpose.msra.mxu0 0.0
        %941 = vmatpush.xpose.msra.mxu0 0.0
        %942 = vmatpush.xpose.msra.mxu0 %v926
        %943 = vmatpush.xpose.msra.mxu0 %v924
        %944 = vmatmul.f32.gmra.mxu0 %v920
        %v945 = vpop.f32.mrf.mxu0
        %v946 = vadd.f32 0.0, %v945
        %947 = vmatmul.f32.gmra.mxu0 %v922
        %v948 = vpop.f32.mrf.mxu0
        %v949 = vadd.f32 0.0, %v948
        %950 = vdwg.mxu0
        %v951 = vsel %vm644, %v946, -inf
        %952 = vmax.xlane.f32.xlu0 %v951
        %v953 = vpop.xlane.xlu0 %952
        %v954 = vsel %vm644, %v949, -inf
        %955 = vmax.xlane.f32.xlu0 %v954
        %v956 = vpop.xlane.xlu0 %955
        %v957 = vsub.f32 %v946, %v953
        %v958 = vsub.f32 %v949, %v956
        %v959 = vmul.f32 %v957, 1.442695
        %v960 = vpow.pop %v959
        %v961 = vmul.f32 %v958, 1.442695
        %v962 = vpow.pop %v961
        %v963 = vsel %vm644, %v960, 0.0
        %964 = vadd.xlane.f32.xlu0 %v963
        %v965 = vpop.xlane.xlu0 %964
        %v966 = vsel %vm644, %v962, 0.0
        %967 = vadd.xlane.f32.xlu0 %v966
        %v968 = vpop.xlane.xlu0 %967
        %v969 = vrcp.pop %v965
        %v970 = vmul.f32 %v965, %v969
        %v971 = vsub.f32 1.0, %v970
        %v972 = vmul.f32 %v969, %v971
        %v973 = vadd.f32 %v969, %v972
        %vm974 = vweird.f32 %v965
        %vm975 = vweird.f32 %v969
        %vm976 = vmor %vm974, %vm975
        %v977 = vsel %vm976, %v969, %v973
        %v978 = vand.u32 2147483647, %v965
        %vm979 = vcmp.eq.f32.partialorder %v978, 8.507059e+37
        %v980 = vand.u32 %v965, 2147483648
        %v981 = vor.u32 1.1754944e-38, %v980
        %v982 = vsel %vm979, %v981, %v977
        %v983 = vmul.f32 %v960, %v982
        %v984 = vrcp.pop %v968
        %v985 = vmul.f32 %v968, %v984
        %v986 = vsub.f32 1.0, %v985
        %v987 = vmul.f32 %v984, %v986
        %v988 = vadd.f32 %v984, %v987
        %vm989 = vweird.f32 %v968
        %vm990 = vweird.f32 %v984
        %vm991 = vmor %vm989, %vm990
        %v992 = vsel %vm991, %v984, %v988
        %v993 = vand.u32 2147483647, %v968
        %vm994 = vcmp.eq.f32.partialorder %v993, 8.507059e+37
        %v995 = vand.u32 %v968, 2147483648
        %v996 = vor.u32 1.1754944e-38, %v995
        %v997 = vsel %vm994, %v996, %v992
        %v998 = vmul.f32 %v962, %v997
        %999 = vrot.lane.b32.xlu0 %v601, 64
        %v1000 = vpop.permute.xlu0 %999
        %1001 = vrot.lane.b32.xlu0 %v604, 64
        %v1002 = vpop.permute.xlu0 %1001
        %v1006 = vsel %vm644, %v983, 0
        %v1009 = vsel %vm644, %v998, 0
        %1011 = vmatpush.msra.mxu0 0.0
        %1012 = vmatpush.msra.mxu0 0.0
        %1013 = vmatpush.msra.mxu0 0.0
        %1014 = vmatpush.msra.mxu0 0.0
        %1015 = vmatpush.msra.mxu0 0.0
        %1016 = vmatpush.msra.mxu0 0.0
        %1017 = vmatpush.msra.mxu0 0.0
        %1018 = vmatpush.msra.mxu0 0.0
        %1019 = vmatpush.msra.mxu0 0.0
        %1020 = vmatpush.msra.mxu0 0.0
        %1021 = vmatpush.msra.mxu0 0.0
        %1022 = vmatpush.msra.mxu0 0.0
        %1023 = vmatpush.msra.mxu0 0.0
        %1024 = vmatpush.msra.mxu0 0.0
        %1025 = vmatpush.msra.mxu0 %v1002
        %1026 = vmatpush.msra.mxu0 %v1000
        %1027 = vmatmul.f32.gmra.mxu0 %v1006
        %v1028 = vpop.f32.mrf.mxu0
        %v1029 = vadd.f32 0.0, %v1028
        %1030 = vmatmul.f32.gmra.mxu0 %v1009
        %v1031 = vpop.f32.mrf.mxu0
        %v1032 = vadd.f32 0.0, %v1031
        %1033 = vdwg.mxu0
        %v1034 = vld [vmem:[#allocation10 + $0x40] sm:$0xff]
        %v1035 = vld [vmem:[#allocation10 + $0x48] sm:$0xff]
        %v1036 = vld [vmem:[#allocation10 + $0x50] sm:$0xff]
        %v1037 = vld [vmem:[#allocation10 + $0x58] sm:$0xff]
        %v1039 = vsel %vm608, %v1029, 0
        %v1042 = vsel %vm608, %v1032, 0
        %1044 = vmatpush.msra.mxu0 0.0
        %1045 = vmatpush.msra.mxu0 0.0
        %1046 = vmatpush.msra.mxu0 0.0
        %1047 = vmatpush.msra.mxu0 0.0
        %1048 = vmatpush.msra.mxu0 0.0
        %1049 = vmatpush.msra.mxu0 0.0
        %1050 = vmatpush.msra.mxu0 0.0
        %1051 = vmatpush.msra.mxu0 0.0
        %1052 = vmatpush.msra.mxu0 0.0
        %1053 = vmatpush.msra.mxu0 0.0
        %1054 = vmatpush.msra.mxu0 0.0
        %1055 = vmatpush.msra.mxu0 0.0
        %1056 = vmatpush.msra.mxu0 %v1037
        %1057 = vmatpush.msra.mxu0 %v1036
        %1058 = vmatpush.msra.mxu0 %v1035
        %1059 = vmatpush.msra.mxu0 %v1034
        %1060 = vmatmul.f32.gmra.mxu0 %v1039
        %v1061 = vpop.f32.mrf.mxu0
        %v1062 = vadd.f32 0.0, %v1061
        %1063 = vmatmul.f32.gmra.mxu0 %v1042
        %v1064 = vpop.f32.mrf.mxu0
        %v1065 = vadd.f32 0.0, %v1064
        %1066 = vdwg.mxu0
        %v1067 = vadd.f32 %v907, %v1062
        %v1068 = vadd.f32 %v910, %v1065
        %1069 = vrot.lane.b32.xlu0 %v606, 32
        %v1070 = vpop.permute.xlu0 %1069
        %1071 = vrot.lane.b32.xlu0 %v607, 32
        %v1072 = vpop.permute.xlu0 %1071
        %1073 = vrot.lane.b32.xlu0 %v558, 32
        %v1074 = vpop.permute.xlu0 %1073
        %1075 = vrot.lane.b32.xlu0 %v561, 32
        %v1076 = vpop.permute.xlu0 %1075
        %v1077 = vsel %vm608, %v1070, 0
        %v1079 = vsel %vm608, %v1072, 0
        %v1081 = vsel %vm608, %v1074, 0
        %v1083 = vsel %vm608, %v1076, 0
        %1085 = vmatpush.xpose.msra.mxu0 0.0
        %1086 = vmatpush.xpose.msra.mxu0 0.0
        %1087 = vmatpush.xpose.msra.mxu0 0.0
        %1088 = vmatpush.xpose.msra.mxu0 0.0
        %1089 = vmatpush.xpose.msra.mxu0 0.0
        %1090 = vmatpush.xpose.msra.mxu0 0.0
        %1091 = vmatpush.xpose.msra.mxu0 0.0
        %1092 = vmatpush.xpose.msra.mxu0 0.0
        %1093 = vmatpush.xpose.msra.mxu0 0.0
        %1094 = vmatpush.xpose.msra.mxu0 0.0
        %1095 = vmatpush.xpose.msra.mxu0 0.0
        %1096 = vmatpush.xpose.msra.mxu0 0.0
        %1097 = vmatpush.xpose.msra.mxu0 0.0
        %1098 = vmatpush.xpose.msra.mxu0 0.0
        %1099 = vmatpush.xpose.msra.mxu0 %v1083
        %1100 = vmatpush.xpose.msra.mxu0 %v1081
        %1101 = vmatmul.f32.gmra.mxu0 %v1077
        %v1102 = vpop.f32.mrf.mxu0
        %v1103 = vadd.f32 0.0, %v1102
        %1104 = vmatmul.f32.gmra.mxu0 %v1079
        %v1105 = vpop.f32.mrf.mxu0
        %v1106 = vadd.f32 0.0, %v1105
        %1107 = vdwg.mxu0
        %v1108 = vsel %vm644, %v1103, -inf
        %1109 = vmax.xlane.f32.xlu0 %v1108
        %v1110 = vpop.xlane.xlu0 %1109
        %v1111 = vsel %vm644, %v1106, -inf
        %1112 = vmax.xlane.f32.xlu0 %v1111
        %v1113 = vpop.xlane.xlu0 %1112
        %v1114 = vsub.f32 %v1103, %v1110
        %v1115 = vsub.f32 %v1106, %v1113
        %v1116 = vmul.f32 %v1114, 1.442695
        %v1117 = vpow.pop %v1116
        %v1118 = vmul.f32 %v1115, 1.442695
        %v1119 = vpow.pop %v1118
        %v1120 = vsel %vm644, %v1117, 0.0
        %1121 = vadd.xlane.f32.xlu0 %v1120
        %v1122 = vpop.xlane.xlu0 %1121
        %v1123 = vsel %vm644, %v1119, 0.0
        %1124 = vadd.xlane.f32.xlu0 %v1123
        %v1125 = vpop.xlane.xlu0 %1124
        %v1126 = vrcp.pop %v1122
        %v1127 = vmul.f32 %v1122, %v1126
        %v1128 = vsub.f32 1.0, %v1127
        %v1129 = vmul.f32 %v1126, %v1128
        %v1130 = vadd.f32 %v1126, %v1129
        %vm1131 = vweird.f32 %v1122
        %vm1132 = vweird.f32 %v1126
        %vm1133 = vmor %vm1131, %vm1132
        %v1134 = vsel %vm1133, %v1126, %v1130
        %v1135 = vand.u32 2147483647, %v1122
        %vm1136 = vcmp.eq.f32.partialorder %v1135, 8.507059e+37
        %v1137 = vand.u32 %v1122, 2147483648
        %v1138 = vor.u32 1.1754944e-38, %v1137
        %v1139 = vsel %vm1136, %v1138, %v1134
        %v1140 = vmul.f32 %v1117, %v1139
        %v1141 = vrcp.pop %v1125
        %v1142 = vmul.f32 %v1125, %v1141
        %v1143 = vsub.f32 1.0, %v1142
        %v1144 = vmul.f32 %v1141, %v1143
        %v1145 = vadd.f32 %v1141, %v1144
        %vm1146 = vweird.f32 %v1125
        %vm1147 = vweird.f32 %v1141
        %vm1148 = vmor %vm1146, %vm1147
        %v1149 = vsel %vm1148, %v1141, %v1145
        %v1150 = vand.u32 2147483647, %v1125
        %vm1151 = vcmp.eq.f32.partialorder %v1150, 8.507059e+37
        %v1152 = vand.u32 %v1125, 2147483648
        %v1153 = vor.u32 1.1754944e-38, %v1152
        %v1154 = vsel %vm1151, %v1153, %v1149
        %v1155 = vmul.f32 %v1119, %v1154
        %1156 = vrot.lane.b32.xlu0 %v601, 32
        %v1157 = vpop.permute.xlu0 %1156
        %1158 = vrot.lane.b32.xlu0 %v604, 32
        %v1159 = vpop.permute.xlu0 %1158
        %v1163 = vsel %vm644, %v1140, 0
        %v1166 = vsel %vm644, %v1155, 0
        %1168 = vmatpush.msra.mxu0 0.0
        %1169 = vmatpush.msra.mxu0 0.0
        %1170 = vmatpush.msra.mxu0 0.0
        %1171 = vmatpush.msra.mxu0 0.0
        %1172 = vmatpush.msra.mxu0 0.0
        %1173 = vmatpush.msra.mxu0 0.0
        %1174 = vmatpush.msra.mxu0 0.0
        %1175 = vmatpush.msra.mxu0 0.0
        %1176 = vmatpush.msra.mxu0 0.0
        %1177 = vmatpush.msra.mxu0 0.0
        %1178 = vmatpush.msra.mxu0 0.0
        %1179 = vmatpush.msra.mxu0 0.0
        %1180 = vmatpush.msra.mxu0 0.0
        %1181 = vmatpush.msra.mxu0 0.0
        %1182 = vmatpush.msra.mxu0 %v1159
        %1183 = vmatpush.msra.mxu0 %v1157
        %1184 = vmatmul.f32.gmra.mxu0 %v1163
        %v1185 = vpop.f32.mrf.mxu0
        %v1186 = vadd.f32 0.0, %v1185
        %1187 = vmatmul.f32.gmra.mxu0 %v1166
        %v1188 = vpop.f32.mrf.mxu0
        %v1189 = vadd.f32 0.0, %v1188
        %1190 = vdwg.mxu0
        %v1191 = vld [vmem:[#allocation10 + $0x60] sm:$0xff]
        %v1192 = vld [vmem:[#allocation10 + $0x68] sm:$0xff]
        %v1193 = vld [vmem:[#allocation10 + $0x70] sm:$0xff]
        %v1194 = vld [vmem:[#allocation10 + $0x78] sm:$0xff]
        %v1196 = vsel %vm608, %v1186, 0
        %v1199 = vsel %vm608, %v1189, 0
        %1201 = vmatpush.msra.mxu0 0.0
        %1202 = vmatpush.msra.mxu0 0.0
        %1203 = vmatpush.msra.mxu0 0.0
        %1204 = vmatpush.msra.mxu0 0.0
        %1205 = vmatpush.msra.mxu0 0.0
        %1206 = vmatpush.msra.mxu0 0.0
        %1207 = vmatpush.msra.mxu0 0.0
        %1208 = vmatpush.msra.mxu0 0.0
        %1209 = vmatpush.msra.mxu0 0.0
        %1210 = vmatpush.msra.mxu0 0.0
        %1211 = vmatpush.msra.mxu0 0.0
        %1212 = vmatpush.msra.mxu0 0.0
        %1213 = vmatpush.msra.mxu0 %v1194
        %1214 = vmatpush.msra.mxu0 %v1193
        %1215 = vmatpush.msra.mxu0 %v1192
        %1216 = vmatpush.msra.mxu0 %v1191
        %1217 = vmatmul.f32.gmra.mxu0 %v1196
        %v1218 = vpop.f32.mrf.mxu0
        %v1219 = vadd.f32 0.0, %v1218
        %1220 = vmatmul.f32.gmra.mxu0 %v1199
        %v1221 = vpop.f32.mrf.mxu0
        %v1222 = vadd.f32 0.0, %v1221
        %1223 = vdwg.mxu0
        %v1224 = vadd.f32 %v1067, %v1219
        %v1225 = vadd.f32 %v1068, %v1222
        %v1226 = vld [vmem:[%s8] sm:$0x1]
        %v1228 = vperm.slane %v1226, 0
        %v1230 = vadd.f32 %v1224, %v1228
        %v1231 = vadd.f32 %v1225, %v1228
        %v1232 = vadd.f32 %v1230, %v473
        %v1233 = vadd.f32 %v1231, %v474
        %1234 = vadd.xlane.f32.xlu0 %v1232
        %v1235 = vpop.xlane.xlu0 %1234
        %1236 = vadd.xlane.f32.xlu0 %v1233
        %v1237 = vpop.xlane.xlu0 %1236
        %v1238 = vrcp.pop 128.0
        %v1239 = vmul.f32 128.0, %v1238
        %v1240 = vsub.f32 1.0, %v1239
        %v1241 = vmul.f32 %v1238, %v1240
        %v1242 = vadd.f32 %v1238, %v1241
        %vm1243 = vweird.f32 %v1238
        %v1244 = vsel %vm1243, %v1238, %v1242
        %v1245 = vmul.f32 %v1235, %v1244
        %v1246 = vmul.f32 %v1237, %v1244
        %v1247 = vsub.f32 %v1232, %v1245
        %v1248 = vsub.f32 %v1233, %v1246
        %v1249 = vmul.f32 %v1247, %v1247
        %v1250 = vmul.f32 %v1248, %v1248
        %1251 = vadd.xlane.f32.xlu0 %v1249
        %v1252 = vpop.xlane.xlu0 %1251
        %1253 = vadd.xlane.f32.xlu0 %v1250
        %v1254 = vpop.xlane.xlu0 %1253
        %v1255 = vmul.f32 %v1252, %v1244
        %v1256 = vmul.f32 %v1254, %v1244
        %v1257 = vadd.f32 %v1255, 1e-05
        %v1258 = vadd.f32 %v1256, 1e-05
        %v1259 = vrsqrt.pop %v1257
        %v1260 = vmul.f32 %v1259, %v1257
        %v1261 = vmul.f32 %v1260, %v1259
        %v1262 = vmul.f32 0.5, %v1261
        %v1263 = vsub.f32 1.5, %v1262
        %v1264 = vmul.f32 %v1259, %v1263
        %vm1265 = vweird.f32 %v1257
        %vm1266 = vweird.f32 %v1259
        %vm1267 = vmor %vm1265, %vm1266
        %v1268 = vsel %vm1267, %v1259, %v1264
        %v1269 = vrsqrt.pop %v1258
        %v1270 = vmul.f32 %v1269, %v1258
        %v1271 = vmul.f32 %v1270, %v1269
        %v1272 = vmul.f32 0.5, %v1271
        %v1273 = vsub.f32 1.5, %v1272
        %v1274 = vmul.f32 %v1269, %v1273
        %vm1275 = vweird.f32 %v1258
        %vm1276 = vweird.f32 %v1269
        %vm1277 = vmor %vm1275, %vm1276
        %v1278 = vsel %vm1277, %v1269, %v1274
        %v1279 = vmul.f32 %v1247, %v1268
        %v1280 = vmul.f32 %v1248, %v1278
        %v1281 = vld [vmem:[%s9] sm:$0x1]
        %v1283 = vperm.slane %v1281, 0
        %v1285 = vmul.f32 %v1279, %v1283
        %v1286 = vmul.f32 %v1280, %v1283
        %v1287 = vld [vmem:[%s10] sm:$0x1]
        %v1289 = vperm.slane %v1287, 0
        %v1291 = vadd.f32 %v1285, %v1289
        %v1292 = vadd.f32 %v1286, %v1289
        %1293 = vst [vmem:[%s472] sm:$0xff] %v1291
        %1294 = vst [vmem:[%s472 + $0x8] sm:$0xff] %v1292
        %s1295 = sand.u32 %s274, 1
        %s1296 = scalar_lea.sflag [#allocation4], %s1295
        %s1297 = sand.u32 %s274, 1
        %s1298 = smul.addr %s1297, 16
        %s1299 = scalar_lea.vmem [#allocation11], %s1298
        // Predicated region
        $region85: #{tpu_custom_call.1} parent=63 // pred_check
          %p1300 = pneg %p284
        $region86: #{tpu_custom_call.1} parent=63 // pred_check_branch
          %1302 = sbr.rel (%p1300) target = $region88
        $region87: #{tpu_custom_call.1} parent=63 // pred_region
          %1304 = vsyncadd %s1296, 0
          %s1305 = smul.addr %s30, 2
          %s1306 = smul.addr %s1305, 8
          %s1307 = scalar_lea.hbm %s11, %s1306
          %s1308 = sshll.u32 %s1299, 4
          %s1309 = int_to_ptr.vmem [resolvable:$true] %s1308
          %s1310 = sshll.u32 %s1307, 4
          %s1311 = int_to_ptr.hbm [resolvable:$true] %s1310
          %1316 = dma.vmem_to_hbm [thread:$0]  %s1309, 256, %s1311, %s1296, 128, 128, 8
        $region88: #{tpu_custom_call.1} parent=63 // pred_fallthru
          _
      $region64: #{tpu_custom_call.1} parent=5 // pred_fallthru
        _
      %p1317 = scmp.le.s32.totalorder 2, %s25
      // Predicated region
      $region89: #{tpu_custom_call.1} parent=5 // pred_check
        %p1318 = pneg %p1317
      $region90: #{tpu_custom_call.1} parent=5 // pred_check_branch
        %1320 = sbr.rel (%p1318) target = $region92
      $region91: #{tpu_custom_call.1} parent=5 // pred_region
        %s1321 = ssub.s32 %s25, 2
        // Predicated region
        $region93: #{tpu_custom_call.1} parent=91 // pred_check
          %p1322 = pneg %p290
        $region94: #{tpu_custom_call.1} parent=91 // pred_check_branch
          %1324 = sbr.rel (%p1322) target = $region96
        $region95: #{tpu_custom_call.1} parent=91 // pred_region
          %s1325 = sand.u32 %s275, 1
          %s1326 = scalar_lea.sflag [#allocation4], %s1325
          %s1327 = sand.u32 %s275, 1
          %s1328 = smul.addr %s1327, 16
          %s1329 = scalar_lea.vmem [#allocation11], %s1328
          %1331 = dma.done %s1326, 256
        $region96: #{tpu_custom_call.1} parent=91 // pred_fallthru
          _
      $region92: #{tpu_custom_call.1} parent=5 // pred_fallthru
        _
    $region6: #{tpu_custom_call.1} parent=1 // loop_footer
      %s29 = sadd.s32 1, %s25
    $region7: #{tpu_custom_call.1} parent=1 // loop_footer_branch
      %24 = sbr.rel target = $region3
    $region8: #{tpu_custom_call.1} parent=1 // loop_exit
      _
    %1332 = vsyncpa [#allocation3], 1
    %s1333 = scalar_lea.sflag [#allocation3], 1
    %1334 = vsyncpa %s1333, 1
    %1335 = vsyncpa [#allocation6], 1
    %1336 = vsyncpa [#allocation9], 1
    %1337 = vsyncpa [#allocation4], 1
    %s1338 = scalar_lea.sflag [#allocation4], 1
    %1339 = vsyncpa %s1338, 1

</llo_original>
